<compile_context>
chip_gen: v7x
topology: tpu7x:2x2x1
jax: 0.10.0
libtpu: 0.0.40
codegen_flags: <defaults>
</compile_context>

<pallas_src>
import math
import functools

import jax
import jax.numpy as jnp
from jax.experimental import pallas as pl
from jax.experimental.pallas import tpu as pltpu


# ----------------------------- Pallas kernel -------------------------------

def _sdp_attention_kernel(q_ref, f_ref, wq_ref, bq_ref, wk_ref, bk_ref,
                          wv_ref, bv_ref, wo_ref, bo_ref,
                          out_ref, scores_ref, *, heads, Lk, d_k_h, d_v_h):
    """Fused SDP attention for one batch block, all heads.

    q_ref : (B, emb_dim)              queries block
    f_ref : (B*Lk, d_model)           features block (pre-flattened)
    wq    : (emb_dim,  heads*d_k_h)   block-diagonal, pre-scaled by 1/sqrt(d_k)
    wk    : (d_model,  heads*d_k_h)   block-diagonal
    wv    : (d_model,  heads*d_v_h)   block-diagonal
    wo    : (heads*d_v_h, emb_dim)    rows permuted to head-major order
    b*    : (1, ...) float32 biases (bq pre-scaled, bk/bv/bo tiled per head)
    out   : (B, emb_dim)
    scores: (B, heads*Lk)             lane-dense probabilities
    """
    B, emb_dim = q_ref.shape

    q_all = q_ref[...]                      # (B, emb_dim)      matmul dtype
    f_all = f_ref[...]                      # (B*Lk, d_model)   matmul dtype

    # Head-packed projections: one MXU matmul each, f32 accumulation, f32 bias.
    q_p = jnp.dot(q_all, wq_ref[...], preferred_element_type=jnp.float32) + bq_ref[...]
    k_p = jnp.dot(f_all, wk_ref[...], preferred_element_type=jnp.float32) + bk_ref[...]
    v_p = jnp.dot(f_all, wv_ref[...], preferred_element_type=jnp.float32) + bv_ref[...]

    k_p = k_p.reshape(B, Lk, heads * d_k_h)     # (B, Lk, heads*d_k_h)
    v_p = v_p.reshape(B, Lk, heads * d_v_h)     # (B, Lk, heads*d_v_h)

    # Per-head attention (Lq == 1) on the VPU/XLU; the MXU is reserved for the
    # packed projections above and the output-linear accumulation below.
    out_acc = jnp.zeros((B, emb_dim), jnp.float32)
    for h in range(heads):                                      # static unroll
        q_h = q_p[:, h * d_k_h:(h + 1) * d_k_h]                 # (B, d_k_h)
        k_h = k_p[:, :, h * d_k_h:(h + 1) * d_k_h]              # (B, Lk, d_k_h)
        v_h = v_p[:, :, h * d_v_h:(h + 1) * d_v_h]              # (B, Lk, d_v_h)

        # scores[b, l] = q_h[b, :] . k_h[b, l, :]  (scale already in wq/bq)
        s_h = jnp.sum(q_h[:, None, :] * k_h, axis=-1)           # (B, Lk)
        s_h = s_h - jnp.max(s_h, axis=-1, keepdims=True)
        e_h = jnp.exp(s_h)
        # EUP approximate reciprocal: frees the serial VALU divide.
        p_h = e_h * pl.reciprocal(jnp.sum(e_h, axis=-1, keepdims=True), approx=True)

        # o_h[b, :] = sum_l p_h[b, l] * v_h[b, l, :]
        o_h = jnp.sum(p_h[:, :, None] * v_h, axis=1)            # (B, d_v_h)

        # Lane-dense scores output, written head-by-head (static lane slice).
        scores_ref[:, h * Lk:(h + 1) * Lk] = p_h.astype(scores_ref.dtype)

        # Fused output linear, accumulated per head (wo rows are head-major).
        out_acc = out_acc + jnp.dot(o_h.astype(wo_ref.dtype),
                                    wo_ref[h * d_v_h:(h + 1) * d_v_h, :],
                                    preferred_element_type=jnp.float32)

    out_ref[...] = (out_acc + bo_ref[...]).astype(out_ref.dtype)


# ------------------------------- helpers ------------------------------------

def _head_block_diag(w, heads):
    """Repeat a shared per-head weight on a block diagonal: (i,o)->(h*i, h*o)."""
    return jnp.kron(jnp.eye(heads, dtype=w.dtype), w)


def _default_batch_block(bs, Lk, d_model, itemsize):
    """Batch rows per grid step.

    The block must divide bs and be either the whole batch or a multiple of 8
    (sublane alignment of the second-to-last block dim).  Prefer >= 4 grid
    steps (DMA/compute overlap), accept >= 2 (v7x megacore sharding), and keep
    the per-step features block under ~8 MiB (BlockSpec double-buffers it).
    """
    aligned = [d for d in range(8, bs, 8) if bs % d == 0]
    if not aligned:
        return bs                       # tiny / odd batch: single fused step
    feat_row_bytes = Lk * d_model * itemsize
    cap = 8 << 20
    for min_steps in (4, 2):
        ok = [d for d in aligned if bs // d >= min_steps
              and d * feat_row_bytes <= cap]
        if ok:
            return max(ok)
    return min(aligned)


def _vmem_limit_bytes(batch_block, Lk, d_model, emb_dim, heads, d_k_h, d_v_h,
                      itemsize):
    """Conservative scoped-VMEM budget (double-buffered blocks + weights)."""
    blocks = 2 * batch_block * (Lk * d_model * itemsize      # features
                                + emb_dim * itemsize         # queries
                                + emb_dim * 4                # output
                                + heads * Lk * 4)            # scores
    weights = 2 * itemsize * heads * (emb_dim * d_k_h + d_model * d_k_h
                                      + d_model * d_v_h + d_v_h * emb_dim)
    biases = 2 * 4 * (2 * heads * d_k_h + heads * d_v_h + emb_dim)
    est = blocks + weights + biases
    # Never below the 32 MiB scoped default, never above v7x's 64 MiB physical.
    return int(min(64 << 20, max(32 << 20, 3 * est)))


# ------------------------------- wrapper -----------------------------------

def sdp_attention_forward(params, features, queries, heads, *,
                          batch_block=None, matmul_dtype=jnp.bfloat16):
    """Pallas implementation of SDPAttention.forward (eval mode, no mask).

    features: (bs, Lk, d_model), queries: (bs, emb_dim)
    returns: (output (bs, emb_dim), scores (bs, heads, 1, Lk))

    batch_block: batch rows per grid step.  Must divide bs and be either the
      whole batch or a multiple of 8.  Default: a sublane-aligned divisor
      giving >= 2 (ideally >= 4) grid steps under an ~8 MiB features block.
    matmul_dtype: dtype of the MXU operands (default bfloat16 on all TPU
      generations).  Accumulation, biases and the softmax stay float32.
    """
    bs, Lk, d_model = features.shape
    emb_dim = queries.shape[-1]
    d_k_h = params["wq"].shape[1]
    d_v_h = params["wv"].shape[1]

    itemsize = jnp.dtype(matmul_dtype).itemsize
    if batch_block is None:
        batch_block = _default_batch_block(bs, Lk, d_model, itemsize)
    assert bs % batch_block == 0, "batch_block must divide bs"
    assert batch_block == bs or batch_block % 8 == 0, \
        "batch_block must be the whole batch or a multiple of 8"
    grid = (bs // batch_block,)

    # ---- trace-time parameter massaging (tiny, outside the kernel) ----
    #  * fold the 1/sqrt(d_k) softmax scale into the q projection,
    #  * pack the shared per-head linears into block-diagonal matrices,
    #  * permute w_out rows from PyTorch's d_v-major/head-minor concat order
    #    to head-major so the kernel accumulates per-head with a row slice.
    scale = 1.0 / math.sqrt(d_k_h)
    wq_bd = _head_block_diag(params["wq"] * scale, heads).astype(matmul_dtype)
    wk_bd = _head_block_diag(params["wk"], heads).astype(matmul_dtype)
    wv_bd = _head_block_diag(params["wv"], heads).astype(matmul_dtype)
    bq_bd = jnp.tile(params["bq"] * scale, (1, heads)).astype(jnp.float32)
    bk_bd = jnp.tile(params["bk"], (1, heads)).astype(jnp.float32)
    bv_bd = jnp.tile(params["bv"], (1, heads)).astype(jnp.float32)
    w_out_hm = (params["w_out"].reshape(d_v_h, heads, emb_dim)
                .transpose(1, 0, 2).reshape(heads * d_v_h, emb_dim)
                ).astype(matmul_dtype)
    b_out = params["b_out"].astype(jnp.float32)

    q_in = queries.astype(matmul_dtype)                              # (bs, emb_dim)
    f_in = features.reshape(bs * Lk, d_model).astype(matmul_dtype)   # (bs*Lk, d_model)

    kernel = functools.partial(_sdp_attention_kernel, heads=heads, Lk=Lk,
                               d_k_h=d_k_h, d_v_h=d_v_h)

    vmem_limit = _vmem_limit_bytes(batch_block, Lk, d_model, emb_dim, heads,
                                   d_k_h, d_v_h, itemsize)

    out, scores_flat = pl.pallas_call(
        kernel,
        grid=grid,
        in_specs=[
            pl.BlockSpec((batch_block, emb_dim), lambda b: (b, 0)),        # queries
            pl.BlockSpec((batch_block * Lk, d_model), lambda b: (b, 0)),   # features
            pl.BlockSpec((emb_dim, heads * d_k_h), lambda b: (0, 0)),      # wq_bd
            pl.BlockSpec((1, heads * d_k_h), lambda b: (0, 0)),            # bq_bd
            pl.BlockSpec((d_model, heads * d_k_h), lambda b: (0, 0)),      # wk_bd
            pl.BlockSpec((1, heads * d_k_h), lambda b: (0, 0)),            # bk_bd
            pl.BlockSpec((d_model, heads * d_v_h), lambda b: (0, 0)),      # wv_bd
            pl.BlockSpec((1, heads * d_v_h), lambda b: (0, 0)),            # bv_bd
            pl.BlockSpec((heads * d_v_h, emb_dim), lambda b: (0, 0)),      # w_out
            pl.BlockSpec((1, emb_dim), lambda b: (0, 0)),                  # b_out
        ],
        out_specs=[
            pl.BlockSpec((batch_block, emb_dim), lambda b: (b, 0)),
            pl.BlockSpec((batch_block, heads * Lk), lambda b: (b, 0)),
        ],
        out_shape=[
            jax.ShapeDtypeStruct((bs, emb_dim), jnp.float32),
            jax.ShapeDtypeStruct((bs, heads * Lk), jnp.float32),
        ],
        compiler_params=pltpu.CompilerParams(
            dimension_semantics=("parallel",),
            vmem_limit_bytes=vmem_limit),
    )(q_in, f_in, wq_bd, bq_bd, wk_bd, bk_bd, wv_bd, bv_bd, w_out_hm, b_out)

    scores = scores_flat.reshape(bs, heads, Lk)[:, :, None, :]
    return out, scores


# ------------------------- deterministic params -----------------------------

def init_params(key, d_model, d_k, d_v, emb_dim, heads):
    d_k_h = d_k // heads
    d_v_h = d_v // heads
    dm_h = d_model // heads
    emb_h = emb_dim // heads
    ks = jax.random.split(key, 8)
    u = lambda k, shape, fan_in: jax.random.uniform(
        k, shape, jnp.float32, -1.0 / math.sqrt(fan_in), 1.0 / math.sqrt(fan_in))
    return {
        # stored transposed relative to torch nn.Linear.weight so we do x @ W
        "wq": u(ks[0], (emb_h, d_k_h), emb_h),
        "bq": u(ks[1], (1, d_k_h), emb_h),
        "wk": u(ks[2], (dm_h, d_k_h), dm_h),
        "bk": u(ks[3], (1, d_k_h), dm_h),
        "wv": u(ks[4], (dm_h, d_v_h), dm_h),
        "bv": u(ks[5], (1, d_v_h), dm_h),
        "w_out": u(ks[6], (heads * d_v_h, emb_dim), heads * d_v_h),
        "b_out": u(ks[7], (1, emb_dim), heads * d_v_h),
    }


# -------------------------- pure-JAX reference ------------------------------

def reference_forward(params, features, queries, heads):
    bs, Lk, d_model = features.shape
    emb_dim = queries.shape[-1]
    emb_h, dm_h = emb_dim // heads, d_model // heads
    d_k_h = params["wq"].shape[1]
    d_v_h = params["wv"].shape[1]

    q = queries.reshape(bs, 1, heads, emb_h) @ params["wq"] + params["bq"][0]
    k = features.reshape(bs, Lk, heads, dm_h) @ params["wk"] + params["bk"][0]
    v = features.reshape(bs, Lk, heads, dm_h) @ params["wv"] + params["bv"][0]
    q = q.transpose(0, 2, 1, 3)   # (bs, h, 1, dk)
    k = k.transpose(0, 2, 1, 3)   # (bs, h, Lk, dk)
    v = v.transpose(0, 2, 1, 3)   # (bs, h, Lk, dv)

    scores = jnp.einsum("bhqd,bhkd->bhqk", q, k) / math.sqrt(d_k_h)
    scores = jax.nn.softmax(scores, axis=-1)
    out = jnp.einsum("bhqk,bhkd->bhqd", scores, v)               # (bs, h, 1, dv)
    out = out.reshape(bs, heads, d_v_h)
    concat = out.transpose(0, 2, 1).reshape(bs, d_v_h * heads)   # d_v-major concat
    output = concat @ params["w_out"] + params["b_out"][0]
    return output, scores


# --------------------------------- main --------------------------------------

if __name__ == "__main__":
    bs, Lk = 32, 8
    d_model, d_k, d_v, emb_dim, heads = 32, 32, 32, 32, 2

    key = jax.random.PRNGKey(0)
    kp, kf, kq = jax.random.split(key, 3)
    params = init_params(kp, d_model, d_k, d_v, emb_dim, heads)
    features = jax.random.normal(kf, (bs, Lk, d_model), jnp.float32)
    queries = jax.random.normal(kq, (bs, emb_dim), jnp.float32)

    ref_out, ref_scores = reference_forward(params, features, queries, heads)

    # Default path: bf16 MXU operands, f32 accumulation/softmax, multi-step grid.
    out, scores = sdp_attention_forward(params, features, queries, heads)
    out = jax.block_until_ready(out)
    scores = jax.block_until_ready(scores)
    assert out.shape == (bs, emb_dim)
    assert scores.shape == (bs, heads, 1, Lk)
    assert jnp.allclose(out, ref_out, rtol=2e-2, atol=2e-2)
    assert jnp.allclose(scores, ref_scores, rtol=2e-2, atol=2e-2)

    # f32 MXU path (tighter tolerance; only the EUP approx reciprocal differs).
    out32, scores32 = sdp_attention_forward(params, features, queries, heads,
                                            matmul_dtype=jnp.float32)
    out32 = jax.block_until_ready(out32)
    scores32 = jax.block_until_ready(scores32)
    assert jnp.allclose(out32, ref_out, rtol=5e-3, atol=5e-3)
    assert jnp.allclose(scores32, ref_scores, rtol=5e-3, atol=5e-3)

    print("KERNEL_OK")
</pallas_src>

<mosaic_0001>
module attributes {stable_mosaic.version = 11 : i64} {
  func.func @_sdp_attention_kernel(%arg0: i32, %arg1: memref<8x32xbf16, #tpu.memory_space<vmem>>, %arg2: memref<64x32xbf16, #tpu.memory_space<vmem>>, %arg3: memref<32x32xbf16, #tpu.memory_space<vmem>>, %arg4: memref<1x32xf32, #tpu.memory_space<vmem>>, %arg5: memref<32x32xbf16, #tpu.memory_space<vmem>>, %arg6: memref<1x32xf32, #tpu.memory_space<vmem>>, %arg7: memref<32x32xbf16, #tpu.memory_space<vmem>>, %arg8: memref<1x32xf32, #tpu.memory_space<vmem>>, %arg9: memref<32x32xbf16, #tpu.memory_space<vmem>>, %arg10: memref<1x32xf32, #tpu.memory_space<vmem>>, %arg11: memref<8x32xf32, #tpu.memory_space<vmem>>, %arg12: memref<8x16xf32, #tpu.memory_space<vmem>>) attributes {dimension_semantics = [#tpu.dimension_semantics<parallel>], iteration_bounds = array<i64: 4>, scalar_prefetch = 0 : i64, scratch_operands = 0 : i64, tpu.core_type = #tpu.core_type<tc>, window_params = [{transform_indices = @transform_0, window_bounds = array<i64: 8, 32>}, {transform_indices = @transform_1, window_bounds = array<i64: 64, 32>}, {pipeline_mode = #tpu.pipeline_mode<synchronous>, transform_indices = @transform_2, window_bounds = array<i64: 32, 32>}, {pipeline_mode = #tpu.pipeline_mode<synchronous>, transform_indices = @transform_3, window_bounds = array<i64: 1, 32>}, {pipeline_mode = #tpu.pipeline_mode<synchronous>, transform_indices = @transform_4, window_bounds = array<i64: 32, 32>}, {pipeline_mode = #tpu.pipeline_mode<synchronous>, transform_indices = @transform_5, window_bounds = array<i64: 1, 32>}, {pipeline_mode = #tpu.pipeline_mode<synchronous>, transform_indices = @transform_6, window_bounds = array<i64: 32, 32>}, {pipeline_mode = #tpu.pipeline_mode<synchronous>, transform_indices = @transform_7, window_bounds = array<i64: 1, 32>}, {pipeline_mode = #tpu.pipeline_mode<synchronous>, transform_indices = @transform_8, window_bounds = array<i64: 32, 32>}, {pipeline_mode = #tpu.pipeline_mode<synchronous>, transform_indices = @transform_9, window_bounds = array<i64: 1, 32>}, {transform_indices = @transform_10, window_bounds = array<i64: 8, 32>}, {transform_indices = @transform_11, window_bounds = array<i64: 8, 16>}]} {
    %c0 = arith.constant 0 : index
    %c0_0 = arith.constant 0 : index
    %0 = vector.load %arg1[%c0, %c0_0] : memref<8x32xbf16, #tpu.memory_space<vmem>>, vector<8x32xbf16>
    %c0_1 = arith.constant 0 : index
    %c0_2 = arith.constant 0 : index
    %1 = vector.load %arg2[%c0_1, %c0_2] : memref<64x32xbf16, #tpu.memory_space<vmem>>, vector<64x32xbf16>
    %c0_3 = arith.constant 0 : index
    %c0_4 = arith.constant 0 : index
    %2 = vector.load %arg3[%c0_3, %c0_4] : memref<32x32xbf16, #tpu.memory_space<vmem>>, vector<32x32xbf16>
    %cst = arith.constant dense<0.000000e+00> : vector<8x32xf32>
    %3 = tpu.matmul %0, %2, %cst {dimension_numbers = #tpu.dot_dimension_numbers<[1], [0], [0], [1], [0, 0, 1, 1], [], []>} : vector<8x32xbf16>, vector<32x32xbf16>, vector<8x32xf32> -> vector<8x32xf32>
    %c0_5 = arith.constant 0 : index
    %c0_6 = arith.constant 0 : index
    %4 = vector.load %arg4[%c0_5, %c0_6] : memref<1x32xf32, #tpu.memory_space<vmem>>, vector<1x32xf32>
    %5 = vector.broadcast %4 : vector<1x32xf32> to vector<8x32xf32>
    %6 = arith.addf %3, %5 : vector<8x32xf32>
    %c0_7 = arith.constant 0 : index
    %c0_8 = arith.constant 0 : index
    %7 = vector.load %arg5[%c0_7, %c0_8] : memref<32x32xbf16, #tpu.memory_space<vmem>>, vector<32x32xbf16>
    %cst_9 = arith.constant dense<0.000000e+00> : vector<64x32xf32>
    %8 = tpu.matmul %1, %7, %cst_9 {dimension_numbers = #tpu.dot_dimension_numbers<[1], [0], [0], [1], [0, 0, 1, 1], [], []>} : vector<64x32xbf16>, vector<32x32xbf16>, vector<64x32xf32> -> vector<64x32xf32>
    %c0_10 = arith.constant 0 : index
    %c0_11 = arith.constant 0 : index
    %9 = vector.load %arg6[%c0_10, %c0_11] : memref<1x32xf32, #tpu.memory_space<vmem>>, vector<1x32xf32>
    %10 = vector.broadcast %9 : vector<1x32xf32> to vector<64x32xf32>
    %11 = arith.addf %8, %10 : vector<64x32xf32>
    %c0_12 = arith.constant 0 : index
    %c0_13 = arith.constant 0 : index
    %12 = vector.load %arg7[%c0_12, %c0_13] : memref<32x32xbf16, #tpu.memory_space<vmem>>, vector<32x32xbf16>
    %cst_14 = arith.constant dense<0.000000e+00> : vector<64x32xf32>
    %13 = tpu.matmul %1, %12, %cst_14 {dimension_numbers = #tpu.dot_dimension_numbers<[1], [0], [0], [1], [0, 0, 1, 1], [], []>} : vector<64x32xbf16>, vector<32x32xbf16>, vector<64x32xf32> -> vector<64x32xf32>
    %c0_15 = arith.constant 0 : index
    %c0_16 = arith.constant 0 : index
    %14 = vector.load %arg8[%c0_15, %c0_16] : memref<1x32xf32, #tpu.memory_space<vmem>>, vector<1x32xf32>
    %15 = vector.broadcast %14 : vector<1x32xf32> to vector<64x32xf32>
    %16 = arith.addf %13, %15 : vector<64x32xf32>
    %17 = vector.shape_cast %11 : vector<64x32xf32> to vector<8x8x32xf32>
    %18 = vector.shape_cast %16 : vector<64x32xf32> to vector<8x8x32xf32>
    %cst_17 = arith.constant 0.000000e+00 : f32
    %19 = vector.broadcast %cst_17 : f32 to vector<8x32xf32>
    %20 = vector.extract_strided_slice %6 {offsets = [0, 0], sizes = [8, 16], strides = [1, 1]} : vector<8x32xf32> to vector<8x16xf32>
    %21 = vector.extract_strided_slice %17 {offsets = [0, 0, 0], sizes = [8, 8, 16], strides = [1, 1, 1]} : vector<8x8x32xf32> to vector<8x8x16xf32>
    %22 = vector.extract_strided_slice %18 {offsets = [0, 0, 0], sizes = [8, 8, 16], strides = [1, 1, 1]} : vector<8x8x32xf32> to vector<8x8x16xf32>
    %23 = vector.shape_cast %20 : vector<8x16xf32> to vector<8x1x16xf32>
    %24 = vector.broadcast %23 : vector<8x1x16xf32> to vector<8x8x16xf32>
    %25 = arith.mulf %24, %21 : vector<8x8x16xf32>
    %cst_18 = arith.constant dense<0.000000e+00> : vector<8x8xf32>
    %26 = vector.multi_reduction <add>, %25, %cst_18 [2] : vector<8x8x16xf32> to vector<8x8xf32>
    %cst_19 = arith.constant dense<0xFF800000> : vector<8xf32>
    %27 = vector.multi_reduction <maximumf>, %26, %cst_19 [1] : vector<8x8xf32> to vector<8xf32>
    %28 = vector.shape_cast %27 : vector<8xf32> to vector<8x1xf32>
    %29 = vector.broadcast %28 : vector<8x1xf32> to vector<8x8xf32>
    %30 = arith.subf %26, %29 : vector<8x8xf32>
    %31 = math.exp %30 : vector<8x8xf32>
    %cst_20 = arith.constant dense<0.000000e+00> : vector<8xf32>
    %32 = vector.multi_reduction <add>, %31, %cst_20 [1] : vector<8x8xf32> to vector<8xf32>
    %33 = vector.shape_cast %32 : vector<8xf32> to vector<8x1xf32>
    %34 = tpu.reciprocal %33 {approx = true} : vector<8x1xf32> -> vector<8x1xf32>
    %35 = vector.broadcast %34 : vector<8x1xf32> to vector<8x8xf32>
    %36 = arith.mulf %31, %35 : vector<8x8xf32>
    %37 = vector.shape_cast %36 : vector<8x8xf32> to vector<8x8x1xf32>
    %38 = vector.broadcast %37 : vector<8x8x1xf32> to vector<8x8x16xf32>
    %39 = arith.mulf %38, %22 : vector<8x8x16xf32>
    %cst_21 = arith.constant dense<0.000000e+00> : vector<8x16xf32>
    %40 = vector.multi_reduction <add>, %39, %cst_21 [1] : vector<8x8x16xf32> to vector<8x16xf32>
    %c0_22 = arith.constant 0 : index
    %c0_23 = arith.constant 0 : index
    %41 = vector.load %arg12[%c0_22, %c0_23] : memref<8x16xf32, #tpu.memory_space<vmem>>, vector<8x8xf32>
    tpu.vector_store %arg12[%c0_22, %c0_23], %36 {strides = array<i32>} : memref<8x16xf32, #tpu.memory_space<vmem>>, vector<8x8xf32>,
    %42 = arith.truncf %40 : vector<8x16xf32> to vector<8x16xbf16>
    %c0_24 = arith.constant 0 : index
    %c0_25 = arith.constant 0 : index
    %43 = vector.load %arg9[%c0_24, %c0_25] : memref<32x32xbf16, #tpu.memory_space<vmem>>, vector<16x32xbf16>
    %cst_26 = arith.constant dense<0.000000e+00> : vector<8x32xf32>
    %44 = tpu.matmul %42, %43, %cst_26 {dimension_numbers = #tpu.dot_dimension_numbers<[1], [0], [0], [1], [0, 0, 1, 1], [], []>} : vector<8x16xbf16>, vector<16x32xbf16>, vector<8x32xf32> -> vector<8x32xf32>
    %45 = arith.addf %19, %44 : vector<8x32xf32>
    %46 = vector.extract_strided_slice %6 {offsets = [0, 16], sizes = [8, 16], strides = [1, 1]} : vector<8x32xf32> to vector<8x16xf32>
    %47 = vector.extract_strided_slice %17 {offsets = [0, 0, 16], sizes = [8, 8, 16], strides = [1, 1, 1]} : vector<8x8x32xf32> to vector<8x8x16xf32>
    %48 = vector.extract_strided_slice %18 {offsets = [0, 0, 16], sizes = [8, 8, 16], strides = [1, 1, 1]} : vector<8x8x32xf32> to vector<8x8x16xf32>
    %49 = vector.shape_cast %46 : vector<8x16xf32> to vector<8x1x16xf32>
    %50 = vector.broadcast %49 : vector<8x1x16xf32> to vector<8x8x16xf32>
    %51 = arith.mulf %50, %47 : vector<8x8x16xf32>
    %cst_27 = arith.constant dense<0.000000e+00> : vector<8x8xf32>
    %52 = vector.multi_reduction <add>, %51, %cst_27 [2] : vector<8x8x16xf32> to vector<8x8xf32>
    %cst_28 = arith.constant dense<0xFF800000> : vector<8xf32>
    %53 = vector.multi_reduction <maximumf>, %52, %cst_28 [1] : vector<8x8xf32> to vector<8xf32>
    %54 = vector.shape_cast %53 : vector<8xf32> to vector<8x1xf32>
    %55 = vector.broadcast %54 : vector<8x1xf32> to vector<8x8xf32>
    %56 = arith.subf %52, %55 : vector<8x8xf32>
    %57 = math.exp %56 : vector<8x8xf32>
    %cst_29 = arith.constant dense<0.000000e+00> : vector<8xf32>
    %58 = vector.multi_reduction <add>, %57, %cst_29 [1] : vector<8x8xf32> to vector<8xf32>
    %59 = vector.shape_cast %58 : vector<8xf32> to vector<8x1xf32>
    %60 = tpu.reciprocal %59 {approx = true} : vector<8x1xf32> -> vector<8x1xf32>
    %61 = vector.broadcast %60 : vector<8x1xf32> to vector<8x8xf32>
    %62 = arith.mulf %57, %61 : vector<8x8xf32>
    %63 = vector.shape_cast %62 : vector<8x8xf32> to vector<8x8x1xf32>
    %64 = vector.broadcast %63 : vector<8x8x1xf32> to vector<8x8x16xf32>
    %65 = arith.mulf %64, %48 : vector<8x8x16xf32>
    %cst_30 = arith.constant dense<0.000000e+00> : vector<8x16xf32>
    %66 = vector.multi_reduction <add>, %65, %cst_30 [1] : vector<8x8x16xf32> to vector<8x16xf32>
    %c0_31 = arith.constant 0 : index
    %c8 = arith.constant 8 : index
    %67 = vector.load %arg12[%c0_31, %c8] : memref<8x16xf32, #tpu.memory_space<vmem>>, vector<8x8xf32>
    tpu.vector_store %arg12[%c0_31, %c8], %62 {strides = array<i32>} : memref<8x16xf32, #tpu.memory_space<vmem>>, vector<8x8xf32>,
    %68 = arith.truncf %66 : vector<8x16xf32> to vector<8x16xbf16>
    %c16 = arith.constant 16 : index
    %c0_32 = arith.constant 0 : index
    %69 = vector.load %arg9[%c16, %c0_32] : memref<32x32xbf16, #tpu.memory_space<vmem>>, vector<16x32xbf16>
    %cst_33 = arith.constant dense<0.000000e+00> : vector<8x32xf32>
    %70 = tpu.matmul %68, %69, %cst_33 {dimension_numbers = #tpu.dot_dimension_numbers<[1], [0], [0], [1], [0, 0, 1, 1], [], []>} : vector<8x16xbf16>, vector<16x32xbf16>, vector<8x32xf32> -> vector<8x32xf32>
    %71 = arith.addf %45, %70 : vector<8x32xf32>
    %c0_34 = arith.constant 0 : index
    %c0_35 = arith.constant 0 : index
    %72 = vector.load %arg10[%c0_34, %c0_35] : memref<1x32xf32, #tpu.memory_space<vmem>>, vector<1x32xf32>
    %73 = vector.broadcast %72 : vector<1x32xf32> to vector<8x32xf32>
    %74 = arith.addf %71, %73 : vector<8x32xf32>
    %c0_36 = arith.constant 0 : index
    %c0_37 = arith.constant 0 : index
    %75 = vector.load %arg11[%c0_36, %c0_37] : memref<8x32xf32, #tpu.memory_space<vmem>>, vector<8x32xf32>
    tpu.vector_store %arg11[%c0_36, %c0_37], %74 {strides = array<i32>} : memref<8x32xf32, #tpu.memory_space<vmem>>, vector<8x32xf32>,
    return
  }
  func.func @transform_0(%arg0: i32) -> (i32, i32) {
    %c0_i32 = arith.constant 0 : i32
    %c0_i32_0 = arith.constant 0 : i32
    return %arg0, %c0_i32 : i32, i32
  }
  func.func @transform_1(%arg0: i32) -> (i32, i32) {
    %c0_i32 = arith.constant 0 : i32
    %c0_i32_0 = arith.constant 0 : i32
    return %arg0, %c0_i32 : i32, i32
  }
  func.func @transform_2(%arg0: i32) -> (i32, i32) {
    %c0_i32 = arith.constant 0 : i32
    %c0_i32_0 = arith.constant 0 : i32
    %c0_i32_1 = arith.constant 0 : i32
    return %c0_i32, %c0_i32_0 : i32, i32
  }
  func.func @transform_3(%arg0: i32) -> (i32, i32) {
    %c0_i32 = arith.constant 0 : i32
    %c0_i32_0 = arith.constant 0 : i32
    %c0_i32_1 = arith.constant 0 : i32
    return %c0_i32, %c0_i32_0 : i32, i32
  }
  func.func @transform_4(%arg0: i32) -> (i32, i32) {
    %c0_i32 = arith.constant 0 : i32
    %c0_i32_0 = arith.constant 0 : i32
    %c0_i32_1 = arith.constant 0 : i32
    return %c0_i32, %c0_i32_0 : i32, i32
  }
  func.func @transform_5(%arg0: i32) -> (i32, i32) {
    %c0_i32 = arith.constant 0 : i32
    %c0_i32_0 = arith.constant 0 : i32
    %c0_i32_1 = arith.constant 0 : i32
    return %c0_i32, %c0_i32_0 : i32, i32
  }
  func.func @transform_6(%arg0: i32) -> (i32, i32) {
    %c0_i32 = arith.constant 0 : i32
    %c0_i32_0 = arith.constant 0 : i32
    %c0_i32_1 = arith.constant 0 : i32
    return %c0_i32, %c0_i32_0 : i32, i32
  }
  func.func @transform_7(%arg0: i32) -> (i32, i32) {
    %c0_i32 = arith.constant 0 : i32
    %c0_i32_0 = arith.constant 0 : i32
    %c0_i32_1 = arith.constant 0 : i32
    return %c0_i32, %c0_i32_0 : i32, i32
  }
  func.func @transform_8(%arg0: i32) -> (i32, i32) {
    %c0_i32 = arith.constant 0 : i32
    %c0_i32_0 = arith.constant 0 : i32
    %c0_i32_1 = arith.constant 0 : i32
    return %c0_i32, %c0_i32_0 : i32, i32
  }
  func.func @transform_9(%arg0: i32) -> (i32, i32) {
    %c0_i32 = arith.constant 0 : i32
    %c0_i32_0 = arith.constant 0 : i32
    %c0_i32_1 = arith.constant 0 : i32
    return %c0_i32, %c0_i32_0 : i32, i32
  }
  func.func @transform_10(%arg0: i32) -> (i32, i32) {
    %c0_i32 = arith.constant 0 : i32
    %c0_i32_0 = arith.constant 0 : i32
    return %arg0, %c0_i32 : i32, i32
  }
  func.func @transform_11(%arg0: i32) -> (i32, i32) {
    %c0_i32 = arith.constant 0 : i32
    %c0_i32_0 = arith.constant 0 : i32
    return %arg0, %c0_i32 : i32, i32
  }
}

</mosaic_0001>

<llo_original>
// kernel: tpu_custom_call.1
$region0: #{tpu_custom_call.1}
  #allocation0 [shape = 'u32[]', space=smem, size = 0x4, offset = 0x4, fixed_abs, tag = 'smem constant byte address 0x4 - core index']
  #allocation1 [shape = 'u32[144,128]{1,0:T(1,128)}', space=vmem, size = 0x12000, scoped, tag = 'internal scratch']
  %s0 = inlined_call_operand.vmem [shape: bf16[32,32], index: 0, kind: input, shape index: {}]
  %s1 = inlined_call_operand.vmem [shape: bf16[256,32], index: 1, kind: input, shape index: {}]
  %s2 = inlined_call_operand.vmem [shape: bf16[32,32], index: 2, kind: input, shape index: {}]
  %s3 = inlined_call_operand.vmem [shape: f32[1,32], index: 3, kind: input, shape index: {}]
  %s4 = inlined_call_operand.vmem [shape: bf16[32,32], index: 4, kind: input, shape index: {}]
  %s5 = inlined_call_operand.vmem [shape: f32[1,32], index: 5, kind: input, shape index: {}]
  %s6 = inlined_call_operand.vmem [shape: bf16[32,32], index: 6, kind: input, shape index: {}]
  %s7 = inlined_call_operand.vmem [shape: f32[1,32], index: 7, kind: input, shape index: {}]
  %s8 = inlined_call_operand.vmem [shape: bf16[32,32], index: 8, kind: input, shape index: {}]
  %s9 = inlined_call_operand.vmem [shape: f32[1,32], index: 9, kind: input, shape index: {}]
  %s10 = inlined_call_operand.hbm [shape: f32[32,32], index: 10, kind: output, shape index: {0}]
  %s11 = inlined_call_operand.vmem [shape: f32[32,16], index: 11, kind: output, shape index: {1}]
  %12 = xla_tuple %s10, %s11
  %s13 = sld [smem:[#allocation0]]
  $region81: #{tpu_custom_call.1} parent=0
    _
  %s15 = ssub.s32 1, %s13
  %s16 = scalar_select 0, %s15, %s13
  $region1: #{tpu_custom_call.1} parent=0
    #allocation2 [shape = 'u8[8192]{0}', space=vmem, size = 0x2000, scoped, tag = 'output window, operand 0']
    #allocation3 [shape = 's32[2]{0}', space=sflag, size = 0x8, scoped, tag = 'scoped memory for tpu_custom_call.1']
    %17 = vsyncpa [#allocation3], 0
    %s18 = scalar_lea.sflag [#allocation3], 1
    %19 = vsyncpa %s18, 0
    loop: start=0, step=1, limit=6
    $region2: #{tpu_custom_call.1} parent=1 // loop_pre_header
      _
    $region3: #{tpu_custom_call.1} parent=1 // loop_header
      %s21 = sphi 0, %s25
      %p22 = scmp.ge.s32.totalorder %s21, 6
      %s31 = sphi 0, %s33
      %s34 = sphi 0, %s31
      %s35 = sphi 0, %s34
      %s51 = sphi 0, %s35
      %s57 = sphi 0, %s59
      %s60 = sphi 0, %s57
      %s61 = sphi 0, %s60
      %s77 = sphi 0, %s61
      %s81 = sphi 0, %s81
      %s83 = sphi 0, %s81
      %s84 = sphi 0, %s83
      %s98 = sphi 0, %s84
      %s102 = sphi 0, %s102
      %s104 = sphi 0, %s102
      %s105 = sphi 0, %s104
      %s119 = sphi 0, %s105
      %s123 = sphi 0, %s123
      %s125 = sphi 0, %s123
      %s126 = sphi 0, %s125
      %s140 = sphi 0, %s126
      %s144 = sphi 0, %s144
      %s146 = sphi 0, %s144
      %s147 = sphi 0, %s146
      %s161 = sphi 0, %s147
      %s165 = sphi 0, %s165
      %s167 = sphi 0, %s165
      %s168 = sphi 0, %s167
      %s182 = sphi 0, %s168
      %s186 = sphi 0, %s186
      %s188 = sphi 0, %s186
      %s189 = sphi 0, %s188
      %s203 = sphi 0, %s189
      %s207 = sphi 0, %s207
      %s209 = sphi 0, %s207
      %s210 = sphi 0, %s209
      %s224 = sphi 0, %s210
      %s228 = sphi 0, %s228
      %s230 = sphi 0, %s228
      %s231 = sphi 0, %s230
      %s245 = sphi 0, %s231
      %s251 = sphi 0, %s253
      %s254 = sphi 0, %s251
      %s255 = sphi 0, %s254
      %s271 = sphi 0, %s255
      %s277 = sphi 0, %s279
      %s280 = sphi 0, %s277
      %s281 = sphi 0, %s280
      %s297 = sphi 0, %s281
    $region4: #{tpu_custom_call.1} parent=1 // loop_header_branch
      %24 = sbr.rel (%p22) target = $region8
    $region5: #{tpu_custom_call.1} parent=1 // loop_body
      %s26 = ssub.s32 %s21, 1
      %s27 = ssub.s32 %s21, 2
      %s28 = sadd.s32 %s21, 1
      %s29 = ssub.s32 %s21, %s28
      %p30 = scmp.eq.s32.totalorder %s29, 0
      %s32 = sadd.s32 %s31, 1
      %s33 = scalar_select %p30, %s31, %s32
      %p36 = pneg %p30
      %p37 = scmp.eq.s32.totalorder %s21, 3
      %p38 = por %p36, %p37
      %p39 = scmp.ne.s32.totalorder %s31, %s34
      %p40 = scmp.eq.s32.totalorder %s21, 0
      %p41 = por %p39, %p40
      %p42 = scmp.ne.s32.totalorder %s31, %s34
      %p43 = scmp.eq.s32.totalorder %s26, 3
      %p44 = por %p42, %p43
      %p45 = scmp.ne.s32.totalorder %s34, %s35
      %p46 = scmp.eq.s32.totalorder %s26, 0
      %p47 = por %p45, %p46
      %p48 = scmp.ne.s32.totalorder %s34, %s35
      %p49 = scmp.eq.s32.totalorder %s27, 3
      %p50 = por %p48, %p49
      %p52 = scmp.ne.s32.totalorder %s35, %s51
      %p53 = scmp.eq.s32.totalorder %s27, 0
      %p54 = por %p52, %p53
      %s55 = ssub.s32 %s21, %s28
      %p56 = scmp.eq.s32.totalorder %s55, 0
      %s58 = sadd.s32 %s57, 1
      %s59 = scalar_select %p56, %s57, %s58
      %p62 = pneg %p56
      %p63 = scmp.eq.s32.totalorder %s21, 3
      %p64 = por %p62, %p63
      %p65 = scmp.ne.s32.totalorder %s57, %s60
      %p66 = scmp.eq.s32.totalorder %s21, 0
      %p67 = por %p65, %p66
      %p68 = scmp.ne.s32.totalorder %s57, %s60
      %p69 = scmp.eq.s32.totalorder %s26, 3
      %p70 = por %p68, %p69
      %p71 = scmp.ne.s32.totalorder %s60, %s61
      %p72 = scmp.eq.s32.totalorder %s26, 0
      %p73 = por %p71, %p72
      %p74 = scmp.ne.s32.totalorder %s60, %s61
      %p75 = scmp.eq.s32.totalorder %s27, 3
      %p76 = por %p74, %p75
      %p78 = scmp.ne.s32.totalorder %s61, %s77
      %p79 = scmp.eq.s32.totalorder %s27, 0
      %p80 = por %p78, %p79
      %s82 = sadd.s32 %s81, 1
      %p85 = scmp.eq.s32.totalorder %s21, 3
      %p86 = scmp.ne.s32.totalorder %s81, %s83
      %p87 = scmp.eq.s32.totalorder %s21, 0
      %p88 = por %p86, %p87
      %p89 = scmp.ne.s32.totalorder %s81, %s83
      %p90 = scmp.eq.s32.totalorder %s26, 3
      %p91 = por %p89, %p90
      %p92 = scmp.ne.s32.totalorder %s83, %s84
      %p93 = scmp.eq.s32.totalorder %s26, 0
      %p94 = por %p92, %p93
      %p95 = scmp.ne.s32.totalorder %s83, %s84
      %p96 = scmp.eq.s32.totalorder %s27, 3
      %p97 = por %p95, %p96
      %p99 = scmp.ne.s32.totalorder %s84, %s98
      %p100 = scmp.eq.s32.totalorder %s27, 0
      %p101 = por %p99, %p100
      %s103 = sadd.s32 %s102, 1
      %p106 = scmp.eq.s32.totalorder %s21, 3
      %p107 = scmp.ne.s32.totalorder %s102, %s104
      %p108 = scmp.eq.s32.totalorder %s21, 0
      %p109 = por %p107, %p108
      %p110 = scmp.ne.s32.totalorder %s102, %s104
      %p111 = scmp.eq.s32.totalorder %s26, 3
      %p112 = por %p110, %p111
      %p113 = scmp.ne.s32.totalorder %s104, %s105
      %p114 = scmp.eq.s32.totalorder %s26, 0
      %p115 = por %p113, %p114
      %p116 = scmp.ne.s32.totalorder %s104, %s105
      %p117 = scmp.eq.s32.totalorder %s27, 3
      %p118 = por %p116, %p117
      %p120 = scmp.ne.s32.totalorder %s105, %s119
      %p121 = scmp.eq.s32.totalorder %s27, 0
      %p122 = por %p120, %p121
      %s124 = sadd.s32 %s123, 1
      %p127 = scmp.eq.s32.totalorder %s21, 3
      %p128 = scmp.ne.s32.totalorder %s123, %s125
      %p129 = scmp.eq.s32.totalorder %s21, 0
      %p130 = por %p128, %p129
      %p131 = scmp.ne.s32.totalorder %s123, %s125
      %p132 = scmp.eq.s32.totalorder %s26, 3
      %p133 = por %p131, %p132
      %p134 = scmp.ne.s32.totalorder %s125, %s126
      %p135 = scmp.eq.s32.totalorder %s26, 0
      %p136 = por %p134, %p135
      %p137 = scmp.ne.s32.totalorder %s125, %s126
      %p138 = scmp.eq.s32.totalorder %s27, 3
      %p139 = por %p137, %p138
      %p141 = scmp.ne.s32.totalorder %s126, %s140
      %p142 = scmp.eq.s32.totalorder %s27, 0
      %p143 = por %p141, %p142
      %s145 = sadd.s32 %s144, 1
      %p148 = scmp.eq.s32.totalorder %s21, 3
      %p149 = scmp.ne.s32.totalorder %s144, %s146
      %p150 = scmp.eq.s32.totalorder %s21, 0
      %p151 = por %p149, %p150
      %p152 = scmp.ne.s32.totalorder %s144, %s146
      %p153 = scmp.eq.s32.totalorder %s26, 3
      %p154 = por %p152, %p153
      %p155 = scmp.ne.s32.totalorder %s146, %s147
      %p156 = scmp.eq.s32.totalorder %s26, 0
      %p157 = por %p155, %p156
      %p158 = scmp.ne.s32.totalorder %s146, %s147
      %p159 = scmp.eq.s32.totalorder %s27, 3
      %p160 = por %p158, %p159
      %p162 = scmp.ne.s32.totalorder %s147, %s161
      %p163 = scmp.eq.s32.totalorder %s27, 0
      %p164 = por %p162, %p163
      %s166 = sadd.s32 %s165, 1
      %p169 = scmp.eq.s32.totalorder %s21, 3
      %p170 = scmp.ne.s32.totalorder %s165, %s167
      %p171 = scmp.eq.s32.totalorder %s21, 0
      %p172 = por %p170, %p171
      %p173 = scmp.ne.s32.totalorder %s165, %s167
      %p174 = scmp.eq.s32.totalorder %s26, 3
      %p175 = por %p173, %p174
      %p176 = scmp.ne.s32.totalorder %s167, %s168
      %p177 = scmp.eq.s32.totalorder %s26, 0
      %p178 = por %p176, %p177
      %p179 = scmp.ne.s32.totalorder %s167, %s168
      %p180 = scmp.eq.s32.totalorder %s27, 3
      %p181 = por %p179, %p180
      %p183 = scmp.ne.s32.totalorder %s168, %s182
      %p184 = scmp.eq.s32.totalorder %s27, 0
      %p185 = por %p183, %p184
      %s187 = sadd.s32 %s186, 1
      %p190 = scmp.eq.s32.totalorder %s21, 3
      %p191 = scmp.ne.s32.totalorder %s186, %s188
      %p192 = scmp.eq.s32.totalorder %s21, 0
      %p193 = por %p191, %p192
      %p194 = scmp.ne.s32.totalorder %s186, %s188
      %p195 = scmp.eq.s32.totalorder %s26, 3
      %p196 = por %p194, %p195
      %p197 = scmp.ne.s32.totalorder %s188, %s189
      %p198 = scmp.eq.s32.totalorder %s26, 0
      %p199 = por %p197, %p198
      %p200 = scmp.ne.s32.totalorder %s188, %s189
      %p201 = scmp.eq.s32.totalorder %s27, 3
      %p202 = por %p200, %p201
      %p204 = scmp.ne.s32.totalorder %s189, %s203
      %p205 = scmp.eq.s32.totalorder %s27, 0
      %p206 = por %p204, %p205
      %s208 = sadd.s32 %s207, 1
      %p211 = scmp.eq.s32.totalorder %s21, 3
      %p212 = scmp.ne.s32.totalorder %s207, %s209
      %p213 = scmp.eq.s32.totalorder %s21, 0
      %p214 = por %p212, %p213
      %p215 = scmp.ne.s32.totalorder %s207, %s209
      %p216 = scmp.eq.s32.totalorder %s26, 3
      %p217 = por %p215, %p216
      %p218 = scmp.ne.s32.totalorder %s209, %s210
      %p219 = scmp.eq.s32.totalorder %s26, 0
      %p220 = por %p218, %p219
      %p221 = scmp.ne.s32.totalorder %s209, %s210
      %p222 = scmp.eq.s32.totalorder %s27, 3
      %p223 = por %p221, %p222
      %p225 = scmp.ne.s32.totalorder %s210, %s224
      %p226 = scmp.eq.s32.totalorder %s27, 0
      %p227 = por %p225, %p226
      %s229 = sadd.s32 %s228, 1
      %p232 = scmp.eq.s32.totalorder %s21, 3
      %p233 = scmp.ne.s32.totalorder %s228, %s230
      %p234 = scmp.eq.s32.totalorder %s21, 0
      %p235 = por %p233, %p234
      %p236 = scmp.ne.s32.totalorder %s228, %s230
      %p237 = scmp.eq.s32.totalorder %s26, 3
      %p238 = por %p236, %p237
      %p239 = scmp.ne.s32.totalorder %s230, %s231
      %p240 = scmp.eq.s32.totalorder %s26, 0
      %p241 = por %p239, %p240
      %p242 = scmp.ne.s32.totalorder %s230, %s231
      %p243 = scmp.eq.s32.totalorder %s27, 3
      %p244 = por %p242, %p243
      %p246 = scmp.ne.s32.totalorder %s231, %s245
      %p247 = scmp.eq.s32.totalorder %s27, 0
      %p248 = por %p246, %p247
      %s249 = ssub.s32 %s21, %s28
      %p250 = scmp.eq.s32.totalorder %s249, 0
      %s252 = sadd.s32 %s251, 1
      %s253 = scalar_select %p250, %s251, %s252
      %p256 = pneg %p250
      %p257 = scmp.eq.s32.totalorder %s21, 3
      %p258 = por %p256, %p257
      %p259 = scmp.ne.s32.totalorder %s251, %s254
      %p260 = scmp.eq.s32.totalorder %s21, 0
      %p261 = por %p259, %p260
      %p262 = scmp.ne.s32.totalorder %s251, %s254
      %p263 = scmp.eq.s32.totalorder %s26, 3
      %p264 = por %p262, %p263
      %p265 = scmp.ne.s32.totalorder %s254, %s255
      %p266 = scmp.eq.s32.totalorder %s26, 0
      %p267 = por %p265, %p266
      %p268 = scmp.ne.s32.totalorder %s254, %s255
      %p269 = scmp.eq.s32.totalorder %s27, 3
      %p270 = por %p268, %p269
      %p272 = scmp.ne.s32.totalorder %s255, %s271
      %p273 = scmp.eq.s32.totalorder %s27, 0
      %p274 = por %p272, %p273
      %s275 = ssub.s32 %s21, %s28
      %p276 = scmp.eq.s32.totalorder %s275, 0
      %s278 = sadd.s32 %s277, 1
      %s279 = scalar_select %p276, %s277, %s278
      %p282 = pneg %p276
      %p283 = scmp.eq.s32.totalorder %s21, 3
      %p284 = por %p282, %p283
      %p285 = scmp.ne.s32.totalorder %s277, %s280
      %p286 = scmp.eq.s32.totalorder %s21, 0
      %p287 = por %p285, %p286
      %p288 = scmp.ne.s32.totalorder %s277, %s280
      %p289 = scmp.eq.s32.totalorder %s26, 3
      %p290 = por %p288, %p289
      %p291 = scmp.ne.s32.totalorder %s280, %s281
      %p292 = scmp.eq.s32.totalorder %s26, 0
      %p293 = por %p291, %p292
      %p294 = scmp.ne.s32.totalorder %s280, %s281
      %p295 = scmp.eq.s32.totalorder %s27, 3
      %p296 = por %p294, %p295
      %p298 = scmp.ne.s32.totalorder %s281, %s297
      %p299 = scmp.eq.s32.totalorder %s27, 0
      %p300 = por %p298, %p299
      %p301 = scmp.le.s32.totalorder 1, %s21
      %p302 = scmp.lt.s32.totalorder %s21, 5
      %p303 = pnand %p301, %p302
      %p304 = pneg %p303
      // Predicated region
      $region9: #{tpu_custom_call.1} parent=5 // pred_check
        _
      $region10: #{tpu_custom_call.1} parent=5 // pred_check_branch
        %306 = sbr.rel (%p303) target = $region12
      $region11: #{tpu_custom_call.1} parent=5 // pred_region
        %s307 = ssub.s32 %s21, 1
        // Predicated region
        $region13: #{tpu_custom_call.1} parent=11 // pred_check
          %p308 = pneg %p94
        $region14: #{tpu_custom_call.1} parent=11 // pred_check_branch
          %310 = sbr.rel (%p308) target = $region16
        $region15: #{tpu_custom_call.1} parent=11 // pred_region
          _
        $region16: #{tpu_custom_call.1} parent=11 // pred_fallthru
          _
        // Predicated region
        $region17: #{tpu_custom_call.1} parent=11 // pred_check
          %p311 = pneg %p115
        $region18: #{tpu_custom_call.1} parent=11 // pred_check_branch
          %313 = sbr.rel (%p311) target = $region20
        $region19: #{tpu_custom_call.1} parent=11 // pred_region
          _
        $region20: #{tpu_custom_call.1} parent=11 // pred_fallthru
          _
        // Predicated region
        $region21: #{tpu_custom_call.1} parent=11 // pred_check
          %p314 = pneg %p136
        $region22: #{tpu_custom_call.1} parent=11 // pred_check_branch
          %316 = sbr.rel (%p314) target = $region24
        $region23: #{tpu_custom_call.1} parent=11 // pred_region
          _
        $region24: #{tpu_custom_call.1} parent=11 // pred_fallthru
          _
        // Predicated region
        $region25: #{tpu_custom_call.1} parent=11 // pred_check
          %p317 = pneg %p157
        $region26: #{tpu_custom_call.1} parent=11 // pred_check_branch
          %319 = sbr.rel (%p317) target = $region28
        $region27: #{tpu_custom_call.1} parent=11 // pred_region
          _
        $region28: #{tpu_custom_call.1} parent=11 // pred_fallthru
          _
        // Predicated region
        $region29: #{tpu_custom_call.1} parent=11 // pred_check
          %p320 = pneg %p178
        $region30: #{tpu_custom_call.1} parent=11 // pred_check_branch
          %322 = sbr.rel (%p320) target = $region32
        $region31: #{tpu_custom_call.1} parent=11 // pred_region
          _
        $region32: #{tpu_custom_call.1} parent=11 // pred_fallthru
          _
        // Predicated region
        $region33: #{tpu_custom_call.1} parent=11 // pred_check
          %p323 = pneg %p199
        $region34: #{tpu_custom_call.1} parent=11 // pred_check_branch
          %325 = sbr.rel (%p323) target = $region36
        $region35: #{tpu_custom_call.1} parent=11 // pred_region
          _
        $region36: #{tpu_custom_call.1} parent=11 // pred_fallthru
          _
        // Predicated region
        $region37: #{tpu_custom_call.1} parent=11 // pred_check
          %p326 = pneg %p220
        $region38: #{tpu_custom_call.1} parent=11 // pred_check_branch
          %328 = sbr.rel (%p326) target = $region40
        $region39: #{tpu_custom_call.1} parent=11 // pred_region
          _
        $region40: #{tpu_custom_call.1} parent=11 // pred_fallthru
          _
        // Predicated region
        $region41: #{tpu_custom_call.1} parent=11 // pred_check
          %p329 = pneg %p241
        $region42: #{tpu_custom_call.1} parent=11 // pred_check_branch
          %331 = sbr.rel (%p329) target = $region44
        $region43: #{tpu_custom_call.1} parent=11 // pred_region
          _
        $region44: #{tpu_custom_call.1} parent=11 // pred_fallthru
          _
      $region12: #{tpu_custom_call.1} parent=5 // pred_fallthru
        _
      %p332 = scmp.lt.s32.totalorder %s21, 4
      // Predicated region
      $region45: #{tpu_custom_call.1} parent=5 // pred_check
        %p333 = pneg %p332
      $region46: #{tpu_custom_call.1} parent=5 // pred_check_branch
        %335 = sbr.rel (%p333) target = $region48
      $region47: #{tpu_custom_call.1} parent=5 // pred_region
        // Predicated region
        $region49: #{tpu_custom_call.1} parent=47 // pred_check
          %p336 = pneg %p41
        $region50: #{tpu_custom_call.1} parent=47 // pred_check_branch
          %338 = sbr.rel (%p336) target = $region52
        $region51: #{tpu_custom_call.1} parent=47 // pred_region
          %p339 = scmp.lt.s32.totalorder %s21, 3
          %s340 = scalar_select %p339, %s21, 3
          %s341 = smul.addr %s340, 4
          %s342 = scalar_lea.vmem %s0, %s341
        $region52: #{tpu_custom_call.1} parent=47 // pred_fallthru
          _
        // Predicated region
        $region53: #{tpu_custom_call.1} parent=47 // pred_check
          %p343 = pneg %p67
        $region54: #{tpu_custom_call.1} parent=47 // pred_check_branch
          %345 = sbr.rel (%p343) target = $region56
        $region55: #{tpu_custom_call.1} parent=47 // pred_region
          %s346 = smul.u32 8, %s21
          %p347 = scmp.lt.s32.totalorder %s346, 31
          %s348 = scalar_select %p347, %s346, 31
          %s349 = smul.addr %s348, 4
          %s350 = scalar_lea.vmem %s1, %s349
          %s351 = smul.u32 8, %s21
        $region56: #{tpu_custom_call.1} parent=47 // pred_fallthru
          _
      $region48: #{tpu_custom_call.1} parent=5 // pred_fallthru
        _
      %p352 = scmp.le.s32.totalorder 1, %s21
      %p353 = scmp.lt.s32.totalorder %s21, 5
      %p354 = pnand %p352, %p353
      %p355 = pneg %p354
      // Predicated region
      $region57: #{tpu_custom_call.1} parent=5 // pred_check
        _
      $region58: #{tpu_custom_call.1} parent=5 // pred_check_branch
        %357 = sbr.rel (%p354) target = $region60
      $region59: #{tpu_custom_call.1} parent=5 // pred_region
        %s358 = ssub.s32 %s21, 1
        %p359 = scmp.lt.s32.totalorder %s26, 3
        %s360 = scalar_select %p359, %s26, 3
        %s361 = smul.addr %s360, 4
        %s362 = scalar_lea.vmem %s0, %s361
        %p363 = pneg %p47
        %p364 = pneg %p44
        %s365 = smul.u32 8, %s26
        %p366 = scmp.lt.s32.totalorder %s365, 31
        %s367 = scalar_select %p366, %s365, 31
        %s368 = smul.addr %s367, 4
        %s369 = scalar_lea.vmem %s1, %s368
        %p370 = pneg %p73
        %p371 = pneg %p70
        %p372 = pneg %p94
        %p373 = pneg %p91
        %p374 = pneg %p115
        %p375 = pneg %p112
        %p376 = pneg %p136
        %p377 = pneg %p133
        %p378 = pneg %p157
        %p379 = pneg %p154
        %p380 = pneg %p178
        %p381 = pneg %p175
        %p382 = pneg %p199
        %p383 = pneg %p196
        %p384 = pneg %p220
        %p385 = pneg %p217
        %p386 = pneg %p241
        %p387 = pneg %p238
        %p388 = pneg %p267
        %p389 = pneg %p264
        %s390 = sand.u32 %s254, 1
        %s391 = scalar_lea.sflag [#allocation3], %s390
        %s392 = sand.u32 %s254, 1
        %s393 = smul.addr %s392, 8
        %s394 = scalar_lea.vmem [#allocation2], %s393
        %p395 = pneg %p293
        %p396 = pneg %p290
        %p397 = scmp.lt.s32.totalorder %s26, 3
        %s398 = scalar_select %p397, %s26, 3
        %s399 = smul.addr %s398, 8
        %s400 = scalar_lea.vmem %s11, %s399
        %p401 = scmp.lt.s32.totalorder %s26, 3
        %s402 = scalar_select %p401, %s26, 3
        %s403 = smul.addr %s402, 4
        %s404 = scalar_lea.vmem %s0, %s403
        %s405 = smul.u32 8, %s26
        %p406 = scmp.lt.s32.totalorder %s405, 31
        %s407 = scalar_select %p406, %s405, 31
        %s408 = smul.addr %s407, 4
        %s409 = scalar_lea.vmem %s1, %s408
        %s410 = smul.u32 8, %s26
        %p411 = scmp.lt.s32.totalorder %s26, 3
        %s412 = scalar_select %p411, %s26, 3
        %s413 = smul.addr %s412, 8
        %s414 = scalar_lea.vmem %s11, %s413
        %v416 = vld [vmem:[%s404] sm:$0xf]
        %v417 = vld [vmem:[%s409] sm:$0xf]
        %v418 = vld [vmem:[%s409 + $0x4] sm:$0xf]
        %v419 = vld [vmem:[%s409 + $0x8] sm:$0xf]
        %v420 = vld [vmem:[%s409 + $0xc] sm:$0xf]
        %v421 = vld [vmem:[%s409 + $0x10] sm:$0xf]
        %v422 = vld [vmem:[%s409 + $0x14] sm:$0xf]
        %v423 = vld [vmem:[%s409 + $0x18] sm:$0xf]
        %v424 = vld [vmem:[%s409 + $0x1c] sm:$0xf]
        %v425 = vld [vmem:[%s2] sm:$0xf]
        %v426 = vld [vmem:[%s2 + $0x4] sm:$0xf]
        %v427 = vld [vmem:[%s2 + $0x8] sm:$0xf]
        %v428 = vld [vmem:[%s2 + $0xc] sm:$0xf]
        %v429 = vld [vmem:[%s3] sm:$0x1]
        %v431 = vlaneseq
        %v432 = vshrl.u32 %v431, 7
        %v433 = vsub.s32 0, %v432
        %v434 = vrot.slane %v429, %v433
        %v440 = vunpack.c.l.b16 %v425
        %v441 = vunpack.c.l.b16 %v426
        %v442 = vunpack.c.l.b16 %v427
        %v443 = vunpack.c.l.b16 %v428
        %v444 = vpack.c.b16 %v441, %v440
        %v445 = vpack.c.b16 %v443, %v442
        %vm448 = vcmask 261120
        %v450 = vsel %vm448, %v416, 0
        %452 = vmatprep.subr.bf16.mxu0 0
        %453 = vmatpush1.bf16.msra.mxu0 %v444
        %454 = vmatprep.subr.bf16.mxu0 0
        %455 = vmatpush1.bf16.msra.mxu0 %v445
        %456 = vmatprep.subr.bf16.mxu0 0
        %457 = vmatpush1.bf16.msra.mxu0 0
        %458 = vmatprep.subr.bf16.mxu0 0
        %459 = vmatpush1.bf16.msra.mxu0 0
        %460 = vmatprep.subr.bf16.mxu0 0
        %461 = vmatpush1.bf16.msra.mxu0 0
        %462 = vmatprep.subr.bf16.mxu0 0
        %463 = vmatpush1.bf16.msra.mxu0 0
        %464 = vmatprep.subr.bf16.mxu0 0
        %465 = vmatpush1.bf16.msra.mxu0 0
        %466 = vmatprep.subr.bf16.mxu0 0
        %467 = vmatpush1.bf16.msra.mxu0 0
        %468 = vmatprep.subr.bf16.mxu0 0
        %469 = vmatpush1.bf16.msra.mxu0 0
        %470 = vmatprep.subr.bf16.mxu0 0
        %471 = vmatpush1.bf16.msra.mxu0 0
        %472 = vmatprep.subr.bf16.mxu0 0
        %473 = vmatpush1.bf16.msra.mxu0 0
        %474 = vmatprep.subr.bf16.mxu0 0
        %475 = vmatpush1.bf16.msra.mxu0 0
        %476 = vmatprep.subr.bf16.mxu0 0
        %477 = vmatpush1.bf16.msra.mxu0 0
        %478 = vmatprep.subr.bf16.mxu0 0
        %479 = vmatpush1.bf16.msra.mxu0 0
        %480 = vmatprep.subr.bf16.mxu0 0
        %481 = vmatpush1.bf16.msra.mxu0 0
        %482 = vmatprep.subr.bf16.mxu0 0
        %483 = vmatpush1.bf16.msra.mxu0 0
        %484 = vmatprep.mubr.bf16.mxu0 0
        %485 = vmatmul.mubr.bf16.gmra.mrb[0].mxu0 %v450
        %v486 = vpop.f32.mrb[0].mxu0
        %v487 = vadd.f32 %v434, %v486
        %v488 = vpop.f32.mrb[0].mxu0
        %v489 = vpop.f32.mrb[0].mxu0
        %v490 = vpop.f32.mrb[0].mxu0
        %491 = vdwg.mxu0
        %v492 = vld [vmem:[%s4] sm:$0xf]
        %v493 = vld [vmem:[%s4 + $0x4] sm:$0xf]
        %v494 = vld [vmem:[%s4 + $0x8] sm:$0xf]
        %v495 = vld [vmem:[%s4 + $0xc] sm:$0xf]
        %v496 = vld [vmem:[%s5] sm:$0x1]
        %v498 = vlaneseq
        %v499 = vshrl.u32 %v498, 7
        %v500 = vsub.s32 0, %v499
        %v501 = vrot.slane %v496, %v500
        %v511 = vunpack.c.l.b16 %v417
        %v512 = vunpack.c.l.b16 %v418
        %v513 = vunpack.c.l.b16 %v419
        %v514 = vunpack.c.l.b16 %v420
        %v515 = vunpack.c.l.b16 %v421
        %v516 = vunpack.c.l.b16 %v422
        %v517 = vunpack.c.l.b16 %v423
        %v518 = vunpack.c.l.b16 %v424
        %v519 = vpack.c.b16 %v512, %v511
        %v520 = vpack.c.b16 %v514, %v513
        %v521 = vpack.c.b16 %v516, %v515
        %v522 = vpack.c.b16 %v518, %v517
        %v527 = vunpack.c.l.b16 %v492
        %v528 = vunpack.c.l.b16 %v493
        %v529 = vunpack.c.l.b16 %v494
        %v530 = vunpack.c.l.b16 %v495
        %v531 = vpack.c.b16 %v528, %v527
        %v532 = vpack.c.b16 %v530, %v529
        %v536 = vsel %vm448, %v519, 0
        %v539 = vsel %vm448, %v520, 0
        %v542 = vsel %vm448, %v521, 0
        %v545 = vsel %vm448, %v522, 0
        %547 = vmatprep.subr.bf16.mxu0 0
        %548 = vmatpush1.bf16.msra.mxu0 %v531
        %549 = vmatprep.subr.bf16.mxu0 0
        %550 = vmatpush1.bf16.msra.mxu0 %v532
        %551 = vmatprep.subr.bf16.mxu0 0
        %552 = vmatpush1.bf16.msra.mxu0 0
        %553 = vmatprep.subr.bf16.mxu0 0
        %554 = vmatpush1.bf16.msra.mxu0 0
        %555 = vmatprep.subr.bf16.mxu0 0
        %556 = vmatpush1.bf16.msra.mxu0 0
        %557 = vmatprep.subr.bf16.mxu0 0
        %558 = vmatpush1.bf16.msra.mxu0 0
        %559 = vmatprep.subr.bf16.mxu0 0
        %560 = vmatpush1.bf16.msra.mxu0 0
        %561 = vmatprep.subr.bf16.mxu0 0
        %562 = vmatpush1.bf16.msra.mxu0 0
        %563 = vmatprep.subr.bf16.mxu0 0
        %564 = vmatpush1.bf16.msra.mxu0 0
        %565 = vmatprep.subr.bf16.mxu0 0
        %566 = vmatpush1.bf16.msra.mxu0 0
        %567 = vmatprep.subr.bf16.mxu0 0
        %568 = vmatpush1.bf16.msra.mxu0 0
        %569 = vmatprep.subr.bf16.mxu0 0
        %570 = vmatpush1.bf16.msra.mxu0 0
        %571 = vmatprep.subr.bf16.mxu0 0
        %572 = vmatpush1.bf16.msra.mxu0 0
        %573 = vmatprep.subr.bf16.mxu0 0
        %574 = vmatpush1.bf16.msra.mxu0 0
        %575 = vmatprep.subr.bf16.mxu0 0
        %576 = vmatpush1.bf16.msra.mxu0 0
        %577 = vmatprep.subr.bf16.mxu0 0
        %578 = vmatpush1.bf16.msra.mxu0 0
        %579 = vmatprep.mubr.bf16.mxu0 0
        %580 = vmatmul.mubr.bf16.gmra.mrb[0].mxu0 %v536
        %v581 = vpop.f32.mrb[0].mxu0
        %v582 = vadd.f32 %v501, %v581
        %v583 = vpop.f32.mrb[0].mxu0
        %v584 = vpop.f32.mrb[0].mxu0
        %v585 = vadd.f32 %v501, %v584
        %v586 = vpop.f32.mrb[0].mxu0
        %587 = vmatprep.mubr.bf16.mxu0 0
        %588 = vmatmul.mubr.bf16.gmra.mrb[0].mxu0 %v539
        %v589 = vpop.f32.mrb[0].mxu0
        %v590 = vadd.f32 %v501, %v589
        %v591 = vpop.f32.mrb[0].mxu0
        %v592 = vpop.f32.mrb[0].mxu0
        %v593 = vadd.f32 %v501, %v592
        %v594 = vpop.f32.mrb[0].mxu0
        %595 = vmatprep.mubr.bf16.mxu0 0
        %596 = vmatmul.mubr.bf16.gmra.mrb[0].mxu0 %v542
        %v597 = vpop.f32.mrb[0].mxu0
        %v598 = vadd.f32 %v501, %v597
        %v599 = vpop.f32.mrb[0].mxu0
        %v600 = vpop.f32.mrb[0].mxu0
        %v601 = vadd.f32 %v501, %v600
        %v602 = vpop.f32.mrb[0].mxu0
        %603 = vmatprep.mubr.bf16.mxu0 0
        %604 = vmatmul.mubr.bf16.gmra.mrb[0].mxu0 %v545
        %v605 = vpop.f32.mrb[0].mxu0
        %v606 = vadd.f32 %v501, %v605
        %v607 = vpop.f32.mrb[0].mxu0
        %v608 = vpop.f32.mrb[0].mxu0
        %v609 = vadd.f32 %v501, %v608
        %v610 = vpop.f32.mrb[0].mxu0
        %611 = vdwg.mxu0
        %v612 = vld [vmem:[%s6] sm:$0xf]
        %v613 = vld [vmem:[%s6 + $0x4] sm:$0xf]
        %v614 = vld [vmem:[%s6 + $0x8] sm:$0xf]
        %v615 = vld [vmem:[%s6 + $0xc] sm:$0xf]
        %v616 = vld [vmem:[%s7] sm:$0x1]
        %v618 = vlaneseq
        %v619 = vshrl.u32 %v618, 7
        %v620 = vsub.s32 0, %v619
        %v621 = vrot.slane %v616, %v620
        %v627 = vunpack.c.l.b16 %v612
        %v628 = vunpack.c.l.b16 %v613
        %v629 = vunpack.c.l.b16 %v614
        %v630 = vunpack.c.l.b16 %v615
        %v631 = vpack.c.b16 %v628, %v627
        %v632 = vpack.c.b16 %v630, %v629
        %635 = vmatprep.subr.bf16.mxu0 0
        %636 = vmatpush1.bf16.msra.mxu0 %v631
        %637 = vmatprep.subr.bf16.mxu0 0
        %638 = vmatpush1.bf16.msra.mxu0 %v632
        %639 = vmatprep.subr.bf16.mxu0 0
        %640 = vmatpush1.bf16.msra.mxu0 0
        %641 = vmatprep.subr.bf16.mxu0 0
        %642 = vmatpush1.bf16.msra.mxu0 0
        %643 = vmatprep.subr.bf16.mxu0 0
        %644 = vmatpush1.bf16.msra.mxu0 0
        %645 = vmatprep.subr.bf16.mxu0 0
        %646 = vmatpush1.bf16.msra.mxu0 0
        %647 = vmatprep.subr.bf16.mxu0 0
        %648 = vmatpush1.bf16.msra.mxu0 0
        %649 = vmatprep.subr.bf16.mxu0 0
        %650 = vmatpush1.bf16.msra.mxu0 0
        %651 = vmatprep.subr.bf16.mxu0 0
        %652 = vmatpush1.bf16.msra.mxu0 0
        %653 = vmatprep.subr.bf16.mxu0 0
        %654 = vmatpush1.bf16.msra.mxu0 0
        %655 = vmatprep.subr.bf16.mxu0 0
        %656 = vmatpush1.bf16.msra.mxu0 0
        %657 = vmatprep.subr.bf16.mxu0 0
        %658 = vmatpush1.bf16.msra.mxu0 0
        %659 = vmatprep.subr.bf16.mxu0 0
        %660 = vmatpush1.bf16.msra.mxu0 0
        %661 = vmatprep.subr.bf16.mxu0 0
        %662 = vmatpush1.bf16.msra.mxu0 0
        %663 = vmatprep.subr.bf16.mxu0 0
        %664 = vmatpush1.bf16.msra.mxu0 0
        %665 = vmatprep.subr.bf16.mxu0 0
        %666 = vmatpush1.bf16.msra.mxu0 0
        %667 = vmatprep.mubr.bf16.mxu0 0
        %668 = vmatmul.mubr.bf16.gmra.mrb[0].mxu0 %v536
        %v669 = vpop.f32.mrb[0].mxu0
        %v670 = vadd.f32 %v621, %v669
        %v671 = vpop.f32.mrb[0].mxu0
        %v672 = vpop.f32.mrb[0].mxu0
        %v673 = vadd.f32 %v621, %v672
        %v674 = vpop.f32.mrb[0].mxu0
        %675 = vmatprep.mubr.bf16.mxu0 0
        %676 = vmatmul.mubr.bf16.gmra.mrb[0].mxu0 %v539
        %v677 = vpop.f32.mrb[0].mxu0
        %v678 = vadd.f32 %v621, %v677
        %v679 = vpop.f32.mrb[0].mxu0
        %v680 = vpop.f32.mrb[0].mxu0
        %v681 = vadd.f32 %v621, %v680
        %v682 = vpop.f32.mrb[0].mxu0
        %683 = vmatprep.mubr.bf16.mxu0 0
        %684 = vmatmul.mubr.bf16.gmra.mrb[0].mxu0 %v542
        %v685 = vpop.f32.mrb[0].mxu0
        %v686 = vadd.f32 %v621, %v685
        %v687 = vpop.f32.mrb[0].mxu0
        %v688 = vpop.f32.mrb[0].mxu0
        %v689 = vadd.f32 %v621, %v688
        %v690 = vpop.f32.mrb[0].mxu0
        %691 = vmatprep.mubr.bf16.mxu0 0
        %692 = vmatmul.mubr.bf16.gmra.mrb[0].mxu0 %v545
        %v693 = vpop.f32.mrb[0].mxu0
        %v694 = vadd.f32 %v621, %v693
        %v695 = vpop.f32.mrb[0].mxu0
        %v696 = vpop.f32.mrb[0].mxu0
        %v697 = vadd.f32 %v621, %v696
        %v698 = vpop.f32.mrb[0].mxu0
        %699 = vdwg.mxu0
        %v701 = vcombine.high %v487, %v487
        %v703 = vunpack.c.l.s4 1966171168
        %v704 = vunpack.c.0.s8 %v703
        %v705 = vlaneseq
        %v706 = vshrl.u32 %v705, 7
        %v707 = vsub.s32 %v704, %v706
        %v708 = vrot.slane %v487, %v707
        %v710 = vunpack.c.l.s4 1966171168
        %v711 = vunpack.c.0.s8 %v710
        %v712 = vlaneseq
        %v713 = vshrl.u32 %v712, 7
        %v714 = vsub.s32 %v711, %v713
        %v715 = vrot.slane %v701, %v714
        %v716 = vcombine.high %v708, %v708
        %v717 = vcombine.high %v715, %v715
        %v719 = vunpack.c.l.s4 1966171168
        %v720 = vunpack.c.0.s8 %v719
        %v721 = vlaneseq
        %v722 = vshrl.u32 %v721, 7
        %v723 = vsub.s32 %v720, %v722
        %v724 = vrot.slane %v708, %v723
        %v726 = vunpack.c.l.s4 1966171168
        %v727 = vunpack.c.0.s8 %v726
        %v728 = vlaneseq
        %v729 = vshrl.u32 %v728, 7
        %v730 = vsub.s32 %v727, %v729
        %v731 = vrot.slane %v715, %v730
        %v733 = vunpack.c.l.s4 1966171168
        %v734 = vunpack.c.0.s8 %v733
        %v735 = vlaneseq
        %v736 = vshrl.u32 %v735, 7
        %v737 = vsub.s32 %v734, %v736
        %v738 = vrot.slane %v716, %v737
        %v740 = vunpack.c.l.s4 1966171168
        %v741 = vunpack.c.0.s8 %v740
        %v742 = vlaneseq
        %v743 = vshrl.u32 %v742, 7
        %v744 = vsub.s32 %v741, %v743
        %v745 = vrot.slane %v717, %v744
        %v746 = vcombine.high %v724, %v724
        %v747 = vcombine.high %v731, %v731
        %v748 = vcombine.high %v738, %v738
        %v749 = vcombine.high %v745, %v745
        %v750 = vlaneseq
        %v751 = vshrl.u32 %v750, 7
        %v752 = vsub.s32 0, %v751
        %v753 = vrot.slane %v724, %v752
        %v754 = vlaneseq
        %v755 = vshrl.u32 %v754, 7
        %v756 = vsub.s32 0, %v755
        %v757 = vrot.slane %v738, %v756
        %v758 = vlaneseq
        %v759 = vshrl.u32 %v758, 7
        %v760 = vsub.s32 0, %v759
        %v761 = vrot.slane %v746, %v760
        %v762 = vlaneseq
        %v763 = vshrl.u32 %v762, 7
        %v764 = vsub.s32 0, %v763
        %v765 = vrot.slane %v748, %v764
        %v766 = vlaneseq
        %v767 = vshrl.u32 %v766, 7
        %v768 = vsub.s32 0, %v767
        %v769 = vrot.slane %v731, %v768
        %v770 = vlaneseq
        %v771 = vshrl.u32 %v770, 7
        %v772 = vsub.s32 0, %v771
        %v773 = vrot.slane %v745, %v772
        %v774 = vlaneseq
        %v775 = vshrl.u32 %v774, 7
        %v776 = vsub.s32 0, %v775
        %v777 = vrot.slane %v747, %v776
        %v778 = vlaneseq
        %v779 = vshrl.u32 %v778, 7
        %v780 = vsub.s32 0, %v779
        %v781 = vrot.slane %v749, %v780
        %v790 = vmul.f32 %v753, %v582
        %v791 = vmul.f32 %v757, %v585
        %v792 = vmul.f32 %v761, %v590
        %v793 = vmul.f32 %v765, %v593
        %v794 = vmul.f32 %v769, %v598
        %v795 = vmul.f32 %v773, %v601
        %v796 = vmul.f32 %v777, %v606
        %v797 = vmul.f32 %v781, %v609
        %vm798 = vcmask 130048
        %v799 = vsel %vm798, %v790, 0.0
        %800 = vadd.xlane.f32.xlu0 %v799
        %v801 = vpop.xlane.xlu0 %800
        %v802 = vsel %vm798, %v791, 0.0
        %803 = vadd.xlane.f32.xlu0 %v802
        %v804 = vpop.xlane.xlu0 %803
        %v805 = vsel %vm798, %v792, 0.0
        %806 = vadd.xlane.f32.xlu0 %v805
        %v807 = vpop.xlane.xlu0 %806
        %v808 = vsel %vm798, %v793, 0.0
        %809 = vadd.xlane.f32.xlu0 %v808
        %v810 = vpop.xlane.xlu0 %809
        %v811 = vsel %vm798, %v794, 0.0
        %812 = vadd.xlane.f32.xlu0 %v811
        %v813 = vpop.xlane.xlu0 %812
        %v814 = vsel %vm798, %v795, 0.0
        %815 = vadd.xlane.f32.xlu0 %v814
        %v816 = vpop.xlane.xlu0 %815
        %v817 = vsel %vm798, %v796, 0.0
        %818 = vadd.xlane.f32.xlu0 %v817
        %v819 = vpop.xlane.xlu0 %818
        %v820 = vsel %vm798, %v797, 0.0
        %821 = vadd.xlane.f32.xlu0 %v820
        %v822 = vpop.xlane.xlu0 %821
        %v831 = vlaneseq
        %v832 = vand.u32 %v831, 127
        %v833 = vlaneseq
        %v834 = vshrl.u32 %v833, 7
        %v835 = vsub.s32 %v832, %v834
        %v836 = vrot.slane %v801, %v835
        %v837 = vlaneseq
        %v838 = vshrl.u32 %v837, 7
        %v839 = vsub.s32 %v832, %v838
        %v840 = vrot.slane %v804, %v839
        %v841 = vlaneseq
        %v842 = vshrl.u32 %v841, 7
        %v843 = vsub.s32 %v832, %v842
        %v844 = vrot.slane %v807, %v843
        %v845 = vlaneseq
        %v846 = vshrl.u32 %v845, 7
        %v847 = vsub.s32 %v832, %v846
        %v848 = vrot.slane %v810, %v847
        %v849 = vlaneseq
        %v850 = vshrl.u32 %v849, 7
        %v851 = vsub.s32 %v832, %v850
        %v852 = vrot.slane %v813, %v851
        %v853 = vlaneseq
        %v854 = vshrl.u32 %v853, 7
        %v855 = vsub.s32 %v832, %v854
        %v856 = vrot.slane %v816, %v855
        %v857 = vlaneseq
        %v858 = vshrl.u32 %v857, 7
        %v859 = vsub.s32 %v832, %v858
        %v860 = vrot.slane %v819, %v859
        %v861 = vlaneseq
        %v862 = vshrl.u32 %v861, 7
        %v863 = vsub.s32 %v832, %v862
        %v864 = vrot.slane %v822, %v863
        %vm865 = vcmask 1041409
        %v866 = vsel %vm865, %v840, %v836
        %vm867 = vcmask 1042434
        %v868 = vsel %vm867, %v844, %v866
        %vm869 = vcmask 1043459
        %v870 = vsel %vm869, %v848, %v868
        %vm871 = vcmask 1044484
        %v872 = vsel %vm871, %v852, %v870
        %vm873 = vcmask 1045509
        %v874 = vsel %vm873, %v856, %v872
        %vm875 = vcmask 1046534
        %v876 = vsel %vm875, %v860, %v874
        %vm877 = vcmask 1047559
        %v878 = vsel %vm877, %v864, %v876
        %vm880 = vcmask 64512
        %v881 = vsel %vm880, %v878, -inf
        %882 = vmax.xlane.f32.xlu0 %v881
        %v883 = vpop.xlane.xlu0 %882
        %v885 = vlaneseq
        %v886 = vshrl.u32 %v885, 7
        %v887 = vsub.s32 0, %v886
        %v888 = vrot.slane %v883, %v887
        %v889 = vlaneseq
        %v890 = vshrl.u32 %v889, 7
        %v891 = vsub.s32 1, %v890
        %v892 = vrot.slane %v883, %v891
        %v893 = vlaneseq
        %v894 = vshrl.u32 %v893, 7
        %v895 = vsub.s32 2, %v894
        %v896 = vrot.slane %v883, %v895
        %v897 = vlaneseq
        %v898 = vshrl.u32 %v897, 7
        %v899 = vsub.s32 3, %v898
        %v900 = vrot.slane %v883, %v899
        %v901 = vlaneseq
        %v902 = vshrl.u32 %v901, 7
        %v903 = vsub.s32 4, %v902
        %v904 = vrot.slane %v883, %v903
        %v905 = vlaneseq
        %v906 = vshrl.u32 %v905, 7
        %v907 = vsub.s32 5, %v906
        %v908 = vrot.slane %v883, %v907
        %v909 = vlaneseq
        %v910 = vshrl.u32 %v909, 7
        %v911 = vsub.s32 6, %v910
        %v912 = vrot.slane %v883, %v911
        %v913 = vlaneseq
        %v914 = vshrl.u32 %v913, 7
        %v915 = vsub.s32 7, %v914
        %v916 = vrot.slane %v883, %v915
        %v925 = vsub.f32 %v801, %v888
        %v926 = vsub.f32 %v804, %v892
        %v927 = vsub.f32 %v807, %v896
        %v928 = vsub.f32 %v810, %v900
        %v929 = vsub.f32 %v813, %v904
        %v930 = vsub.f32 %v816, %v908
        %v931 = vsub.f32 %v819, %v912
        %v932 = vsub.f32 %v822, %v916
        %v933 = vmul.f32 %v925, 1.442695
        %v934 = vpow.pop %v933
        %v935 = vmul.f32 %v926, 1.442695
        %v936 = vpow.pop %v935
        %v937 = vmul.f32 %v927, 1.442695
        %v938 = vpow.pop %v937
        %v939 = vmul.f32 %v928, 1.442695
        %v940 = vpow.pop %v939
        %v941 = vmul.f32 %v929, 1.442695
        %v942 = vpow.pop %v941
        %v943 = vmul.f32 %v930, 1.442695
        %v944 = vpow.pop %v943
        %v945 = vmul.f32 %v931, 1.442695
        %v946 = vpow.pop %v945
        %v947 = vmul.f32 %v932, 1.442695
        %v948 = vpow.pop %v947
        %957 = vset.pattern.permute.xlu0 0
        %958 = vperm.xlu0 %957, %v934
        %v959 = vpop.permute.xlu0 %958
        %960 = vset.pattern.permute.xlu0 0
        %961 = vperm.xlu0 %960, %v936
        %v962 = vpop.permute.xlu0 %961
        %963 = vset.pattern.permute.xlu0 0
        %964 = vperm.xlu0 %963, %v938
        %v965 = vpop.permute.xlu0 %964
        %966 = vset.pattern.permute.xlu0 0
        %967 = vperm.xlu0 %966, %v940
        %v968 = vpop.permute.xlu0 %967
        %969 = vset.pattern.permute.xlu0 0
        %970 = vperm.xlu0 %969, %v942
        %v971 = vpop.permute.xlu0 %970
        %972 = vset.pattern.permute.xlu0 0
        %973 = vperm.xlu0 %972, %v944
        %v974 = vpop.permute.xlu0 %973
        %975 = vset.pattern.permute.xlu0 0
        %976 = vperm.xlu0 %975, %v946
        %v977 = vpop.permute.xlu0 %976
        %978 = vset.pattern.permute.xlu0 0
        %979 = vperm.xlu0 %978, %v948
        %v980 = vpop.permute.xlu0 %979
        %v981 = vlaneseq
        %v982 = vshrl.u32 %v981, 7
        %v983 = vsub.s32 %v832, %v982
        %v984 = vrot.slane %v959, %v983
        %v985 = vlaneseq
        %v986 = vshrl.u32 %v985, 7
        %v987 = vsub.s32 %v832, %v986
        %v988 = vrot.slane %v962, %v987
        %v989 = vlaneseq
        %v990 = vshrl.u32 %v989, 7
        %v991 = vsub.s32 %v832, %v990
        %v992 = vrot.slane %v965, %v991
        %v993 = vlaneseq
        %v994 = vshrl.u32 %v993, 7
        %v995 = vsub.s32 %v832, %v994
        %v996 = vrot.slane %v968, %v995
        %v997 = vlaneseq
        %v998 = vshrl.u32 %v997, 7
        %v999 = vsub.s32 %v832, %v998
        %v1000 = vrot.slane %v971, %v999
        %v1001 = vlaneseq
        %v1002 = vshrl.u32 %v1001, 7
        %v1003 = vsub.s32 %v832, %v1002
        %v1004 = vrot.slane %v974, %v1003
        %v1005 = vlaneseq
        %v1006 = vshrl.u32 %v1005, 7
        %v1007 = vsub.s32 %v832, %v1006
        %v1008 = vrot.slane %v977, %v1007
        %v1009 = vlaneseq
        %v1010 = vshrl.u32 %v1009, 7
        %v1011 = vsub.s32 %v832, %v1010
        %v1012 = vrot.slane %v980, %v1011
        %v1013 = vsel %vm865, %v988, %v984
        %v1014 = vsel %vm867, %v992, %v1013
        %v1015 = vsel %vm869, %v996, %v1014
        %v1016 = vsel %vm871, %v1000, %v1015
        %v1017 = vsel %vm873, %v1004, %v1016
        %v1018 = vsel %vm875, %v1008, %v1017
        %v1019 = vsel %vm877, %v1012, %v1018
        %v1021 = vsel %vm880, %v1019, 0.0
        %1022 = vadd.xlane.f32.xlu0 %v1021
        %v1023 = vpop.xlane.xlu0 %1022
        %v1024 = vrcp.pop %v1023
        %v1026 = vlaneseq
        %v1027 = vshrl.u32 %v1026, 7
        %v1028 = vsub.s32 0, %v1027
        %v1029 = vrot.slane %v1024, %v1028
        %v1030 = vlaneseq
        %v1031 = vshrl.u32 %v1030, 7
        %v1032 = vsub.s32 1, %v1031
        %v1033 = vrot.slane %v1024, %v1032
        %v1034 = vlaneseq
        %v1035 = vshrl.u32 %v1034, 7
        %v1036 = vsub.s32 2, %v1035
        %v1037 = vrot.slane %v1024, %v1036
        %v1038 = vlaneseq
        %v1039 = vshrl.u32 %v1038, 7
        %v1040 = vsub.s32 3, %v1039
        %v1041 = vrot.slane %v1024, %v1040
        %v1042 = vlaneseq
        %v1043 = vshrl.u32 %v1042, 7
        %v1044 = vsub.s32 4, %v1043
        %v1045 = vrot.slane %v1024, %v1044
        %v1046 = vlaneseq
        %v1047 = vshrl.u32 %v1046, 7
        %v1048 = vsub.s32 5, %v1047
        %v1049 = vrot.slane %v1024, %v1048
        %v1050 = vlaneseq
        %v1051 = vshrl.u32 %v1050, 7
        %v1052 = vsub.s32 6, %v1051
        %v1053 = vrot.slane %v1024, %v1052
        %v1054 = vlaneseq
        %v1055 = vshrl.u32 %v1054, 7
        %v1056 = vsub.s32 7, %v1055
        %v1057 = vrot.slane %v1024, %v1056
        %v1066 = vmul.f32 %v934, %v1029
        %v1067 = vmul.f32 %v936, %v1033
        %v1068 = vmul.f32 %v938, %v1037
        %v1069 = vmul.f32 %v940, %v1041
        %v1070 = vmul.f32 %v942, %v1045
        %v1071 = vmul.f32 %v944, %v1049
        %v1072 = vmul.f32 %v946, %v1053
        %v1073 = vmul.f32 %v948, %v1057
        %1075 = vset.pattern.permute.xlu0 0
        %1076 = vperm.xlu0 %1075, %v1066
        %v1077 = vpop.permute.xlu0 %1076
        %1080 = vset.pattern.permute.xlu0 0
        %1081 = vperm.xlu0 %1080, %v1067
        %v1082 = vpop.permute.xlu0 %1081
        %1085 = vset.pattern.permute.xlu0 0
        %1086 = vperm.xlu0 %1085, %v1068
        %v1087 = vpop.permute.xlu0 %1086
        %1090 = vset.pattern.permute.xlu0 0
        %1091 = vperm.xlu0 %1090, %v1069
        %v1092 = vpop.permute.xlu0 %1091
        %1095 = vset.pattern.permute.xlu0 0
        %1096 = vperm.xlu0 %1095, %v1070
        %v1097 = vpop.permute.xlu0 %1096
        %1100 = vset.pattern.permute.xlu0 0
        %1101 = vperm.xlu0 %1100, %v1071
        %v1102 = vpop.permute.xlu0 %1101
        %1105 = vset.pattern.permute.xlu0 0
        %1106 = vperm.xlu0 %1105, %v1072
        %v1107 = vpop.permute.xlu0 %1106
        %1110 = vset.pattern.permute.xlu0 0
        %1111 = vperm.xlu0 %1110, %v1073
        %v1112 = vpop.permute.xlu0 %1111
        %v1114 = vmul.f32 %v1077, %v670
        %v1115 = vmul.f32 %v1082, %v673
        %v1116 = vmul.f32 %v1087, %v678
        %v1117 = vmul.f32 %v1092, %v681
        %v1118 = vmul.f32 %v1097, %v686
        %v1119 = vmul.f32 %v1102, %v689
        %v1120 = vmul.f32 %v1107, %v694
        %v1121 = vmul.f32 %v1112, %v697
        %v1122 = vsel %vm798, %v1114, 0.0
        %v1123 = vrot.slane %v1122, 4
        %v1124 = vadd.f32 %v1122, %v1123
        %v1125 = vrot.slane %v1124, 2
        %v1126 = vadd.f32 %v1124, %v1125
        %v1127 = vrot.slane %v1126, 1
        %v1128 = vadd.f32 %v1126, %v1127
        %v1129 = vsel %vm798, %v1115, 0.0
        %v1130 = vrot.slane %v1129, 4
        %v1131 = vadd.f32 %v1129, %v1130
        %v1132 = vrot.slane %v1131, 2
        %v1133 = vadd.f32 %v1131, %v1132
        %v1134 = vrot.slane %v1133, 1
        %v1135 = vadd.f32 %v1133, %v1134
        %v1136 = vsel %vm798, %v1116, 0.0
        %v1137 = vrot.slane %v1136, 4
        %v1138 = vadd.f32 %v1136, %v1137
        %v1139 = vrot.slane %v1138, 2
        %v1140 = vadd.f32 %v1138, %v1139
        %v1141 = vrot.slane %v1140, 1
        %v1142 = vadd.f32 %v1140, %v1141
        %v1143 = vsel %vm798, %v1117, 0.0
        %v1144 = vrot.slane %v1143, 4
        %v1145 = vadd.f32 %v1143, %v1144
        %v1146 = vrot.slane %v1145, 2
        %v1147 = vadd.f32 %v1145, %v1146
        %v1148 = vrot.slane %v1147, 1
        %v1149 = vadd.f32 %v1147, %v1148
        %v1150 = vsel %vm798, %v1118, 0.0
        %v1151 = vrot.slane %v1150, 4
        %v1152 = vadd.f32 %v1150, %v1151
        %v1153 = vrot.slane %v1152, 2
        %v1154 = vadd.f32 %v1152, %v1153
        %v1155 = vrot.slane %v1154, 1
        %v1156 = vadd.f32 %v1154, %v1155
        %v1157 = vsel %vm798, %v1119, 0.0
        %v1158 = vrot.slane %v1157, 4
        %v1159 = vadd.f32 %v1157, %v1158
        %v1160 = vrot.slane %v1159, 2
        %v1161 = vadd.f32 %v1159, %v1160
        %v1162 = vrot.slane %v1161, 1
        %v1163 = vadd.f32 %v1161, %v1162
        %v1164 = vsel %vm798, %v1120, 0.0
        %v1165 = vrot.slane %v1164, 4
        %v1166 = vadd.f32 %v1164, %v1165
        %v1167 = vrot.slane %v1166, 2
        %v1168 = vadd.f32 %v1166, %v1167
        %v1169 = vrot.slane %v1168, 1
        %v1170 = vadd.f32 %v1168, %v1169
        %v1171 = vsel %vm798, %v1121, 0.0
        %v1172 = vrot.slane %v1171, 4
        %v1173 = vadd.f32 %v1171, %v1172
        %v1174 = vrot.slane %v1173, 2
        %v1175 = vadd.f32 %v1173, %v1174
        %v1176 = vrot.slane %v1175, 1
        %v1177 = vadd.f32 %v1175, %v1176
        %v1178 = vlaneseq
        %v1179 = vshrl.u32 %v1178, 7
        %v1180 = vsub.s32 %v832, %v1179
        %v1181 = vrot.slane %v1077, %v1180
        %v1182 = vlaneseq
        %v1183 = vshrl.u32 %v1182, 7
        %v1184 = vsub.s32 %v832, %v1183
        %v1185 = vrot.slane %v1082, %v1184
        %v1186 = vlaneseq
        %v1187 = vshrl.u32 %v1186, 7
        %v1188 = vsub.s32 %v832, %v1187
        %v1189 = vrot.slane %v1087, %v1188
        %v1190 = vlaneseq
        %v1191 = vshrl.u32 %v1190, 7
        %v1192 = vsub.s32 %v832, %v1191
        %v1193 = vrot.slane %v1092, %v1192
        %v1194 = vlaneseq
        %v1195 = vshrl.u32 %v1194, 7
        %v1196 = vsub.s32 %v832, %v1195
        %v1197 = vrot.slane %v1097, %v1196
        %v1198 = vlaneseq
        %v1199 = vshrl.u32 %v1198, 7
        %v1200 = vsub.s32 %v832, %v1199
        %v1201 = vrot.slane %v1102, %v1200
        %v1202 = vlaneseq
        %v1203 = vshrl.u32 %v1202, 7
        %v1204 = vsub.s32 %v832, %v1203
        %v1205 = vrot.slane %v1107, %v1204
        %v1206 = vlaneseq
        %v1207 = vshrl.u32 %v1206, 7
        %v1208 = vsub.s32 %v832, %v1207
        %v1209 = vrot.slane %v1112, %v1208
        %v1210 = vsel %vm865, %v1185, %v1181
        %v1211 = vsel %vm867, %v1189, %v1210
        %v1212 = vsel %vm869, %v1193, %v1211
        %v1213 = vsel %vm871, %v1197, %v1212
        %v1214 = vsel %vm873, %v1201, %v1213
        %v1215 = vsel %vm875, %v1205, %v1214
        %v1216 = vsel %vm877, %v1209, %v1215
        %1218 = vst.msk [vmem:[%s414] sm:$0xff] %vm880, %v1216
        %v1219 = vpack.c.bf16 %v1128, %v1128
        %v1220 = vpack.c.bf16 %v1135, %v1135
        %v1221 = vpack.c.bf16 %v1142, %v1142
        %v1222 = vpack.c.bf16 %v1149, %v1149
        %v1223 = vpack.c.bf16 %v1156, %v1156
        %v1224 = vpack.c.bf16 %v1163, %v1163
        %v1225 = vpack.c.bf16 %v1170, %v1170
        %v1226 = vpack.c.bf16 %v1177, %v1177
        %v1227 = vld [vmem:[%s8] sm:$0xf]
        %v1228 = vld [vmem:[%s8 + $0x4] sm:$0xf]
        %1237 = vrot.lane.b32.xlu0 %v790, 112
        %v1238 = vpop.permute.xlu0 %1237
        %1239 = vrot.lane.b32.xlu0 %v791, 112
        %v1240 = vpop.permute.xlu0 %1239
        %1241 = vrot.lane.b32.xlu0 %v792, 112
        %v1242 = vpop.permute.xlu0 %1241
        %1243 = vrot.lane.b32.xlu0 %v793, 112
        %v1244 = vpop.permute.xlu0 %1243
        %1245 = vrot.lane.b32.xlu0 %v794, 112
        %v1246 = vpop.permute.xlu0 %1245
        %1247 = vrot.lane.b32.xlu0 %v795, 112
        %v1248 = vpop.permute.xlu0 %1247
        %1249 = vrot.lane.b32.xlu0 %v796, 112
        %v1250 = vpop.permute.xlu0 %1249
        %1251 = vrot.lane.b32.xlu0 %v797, 112
        %v1252 = vpop.permute.xlu0 %1251
        %v1261 = vsel %vm798, %v1238, 0.0
        %1262 = vadd.xlane.f32.xlu0 %v1261
        %v1263 = vpop.xlane.xlu0 %1262
        %v1264 = vsel %vm798, %v1240, 0.0
        %1265 = vadd.xlane.f32.xlu0 %v1264
        %v1266 = vpop.xlane.xlu0 %1265
        %v1267 = vsel %vm798, %v1242, 0.0
        %1268 = vadd.xlane.f32.xlu0 %v1267
        %v1269 = vpop.xlane.xlu0 %1268
        %v1270 = vsel %vm798, %v1244, 0.0
        %1271 = vadd.xlane.f32.xlu0 %v1270
        %v1272 = vpop.xlane.xlu0 %1271
        %v1273 = vsel %vm798, %v1246, 0.0
        %1274 = vadd.xlane.f32.xlu0 %v1273
        %v1275 = vpop.xlane.xlu0 %1274
        %v1276 = vsel %vm798, %v1248, 0.0
        %1277 = vadd.xlane.f32.xlu0 %v1276
        %v1278 = vpop.xlane.xlu0 %1277
        %v1279 = vsel %vm798, %v1250, 0.0
        %1280 = vadd.xlane.f32.xlu0 %v1279
        %v1281 = vpop.xlane.xlu0 %1280
        %v1282 = vsel %vm798, %v1252, 0.0
        %1283 = vadd.xlane.f32.xlu0 %v1282
        %v1284 = vpop.xlane.xlu0 %1283
        %v1293 = vlaneseq
        %v1294 = vshrl.u32 %v1293, 7
        %v1295 = vsub.s32 %v832, %v1294
        %v1296 = vrot.slane %v1263, %v1295
        %v1297 = vlaneseq
        %v1298 = vshrl.u32 %v1297, 7
        %v1299 = vsub.s32 %v832, %v1298
        %v1300 = vrot.slane %v1266, %v1299
        %v1301 = vlaneseq
        %v1302 = vshrl.u32 %v1301, 7
        %v1303 = vsub.s32 %v832, %v1302
        %v1304 = vrot.slane %v1269, %v1303
        %v1305 = vlaneseq
        %v1306 = vshrl.u32 %v1305, 7
        %v1307 = vsub.s32 %v832, %v1306
        %v1308 = vrot.slane %v1272, %v1307
        %v1309 = vlaneseq
        %v1310 = vshrl.u32 %v1309, 7
        %v1311 = vsub.s32 %v832, %v1310
        %v1312 = vrot.slane %v1275, %v1311
        %v1313 = vlaneseq
        %v1314 = vshrl.u32 %v1313, 7
        %v1315 = vsub.s32 %v832, %v1314
        %v1316 = vrot.slane %v1278, %v1315
        %v1317 = vlaneseq
        %v1318 = vshrl.u32 %v1317, 7
        %v1319 = vsub.s32 %v832, %v1318
        %v1320 = vrot.slane %v1281, %v1319
        %v1321 = vlaneseq
        %v1322 = vshrl.u32 %v1321, 7
        %v1323 = vsub.s32 %v832, %v1322
        %v1324 = vrot.slane %v1284, %v1323
        %v1325 = vsel %vm865, %v1300, %v1296
        %v1326 = vsel %vm867, %v1304, %v1325
        %v1327 = vsel %vm869, %v1308, %v1326
        %v1328 = vsel %vm871, %v1312, %v1327
        %v1329 = vsel %vm873, %v1316, %v1328
        %v1330 = vsel %vm875, %v1320, %v1329
        %v1331 = vsel %vm877, %v1324, %v1330
        %v1333 = vsel %vm880, %v1331, -inf
        %1334 = vmax.xlane.f32.xlu0 %v1333
        %v1335 = vpop.xlane.xlu0 %1334
        %v1337 = vlaneseq
        %v1338 = vshrl.u32 %v1337, 7
        %v1339 = vsub.s32 0, %v1338
        %v1340 = vrot.slane %v1335, %v1339
        %v1341 = vlaneseq
        %v1342 = vshrl.u32 %v1341, 7
        %v1343 = vsub.s32 1, %v1342
        %v1344 = vrot.slane %v1335, %v1343
        %v1345 = vlaneseq
        %v1346 = vshrl.u32 %v1345, 7
        %v1347 = vsub.s32 2, %v1346
        %v1348 = vrot.slane %v1335, %v1347
        %v1349 = vlaneseq
        %v1350 = vshrl.u32 %v1349, 7
        %v1351 = vsub.s32 3, %v1350
        %v1352 = vrot.slane %v1335, %v1351
        %v1353 = vlaneseq
        %v1354 = vshrl.u32 %v1353, 7
        %v1355 = vsub.s32 4, %v1354
        %v1356 = vrot.slane %v1335, %v1355
        %v1357 = vlaneseq
        %v1358 = vshrl.u32 %v1357, 7
        %v1359 = vsub.s32 5, %v1358
        %v1360 = vrot.slane %v1335, %v1359
        %v1361 = vlaneseq
        %v1362 = vshrl.u32 %v1361, 7
        %v1363 = vsub.s32 6, %v1362
        %v1364 = vrot.slane %v1335, %v1363
        %v1365 = vlaneseq
        %v1366 = vshrl.u32 %v1365, 7
        %v1367 = vsub.s32 7, %v1366
        %v1368 = vrot.slane %v1335, %v1367
        %v1377 = vsub.f32 %v1263, %v1340
        %v1378 = vsub.f32 %v1266, %v1344
        %v1379 = vsub.f32 %v1269, %v1348
        %v1380 = vsub.f32 %v1272, %v1352
        %v1381 = vsub.f32 %v1275, %v1356
        %v1382 = vsub.f32 %v1278, %v1360
        %v1383 = vsub.f32 %v1281, %v1364
        %v1384 = vsub.f32 %v1284, %v1368
        %v1385 = vmul.f32 %v1377, 1.442695
        %v1386 = vpow.pop %v1385
        %v1387 = vmul.f32 %v1378, 1.442695
        %v1388 = vpow.pop %v1387
        %v1389 = vmul.f32 %v1379, 1.442695
        %v1390 = vpow.pop %v1389
        %v1391 = vmul.f32 %v1380, 1.442695
        %v1392 = vpow.pop %v1391
        %v1393 = vmul.f32 %v1381, 1.442695
        %v1394 = vpow.pop %v1393
        %v1395 = vmul.f32 %v1382, 1.442695
        %v1396 = vpow.pop %v1395
        %v1397 = vmul.f32 %v1383, 1.442695
        %v1398 = vpow.pop %v1397
        %v1399 = vmul.f32 %v1384, 1.442695
        %v1400 = vpow.pop %v1399
        %1409 = vset.pattern.permute.xlu0 0
        %1410 = vperm.xlu0 %1409, %v1386
        %v1411 = vpop.permute.xlu0 %1410
        %1412 = vset.pattern.permute.xlu0 0
        %1413 = vperm.xlu0 %1412, %v1388
        %v1414 = vpop.permute.xlu0 %1413
        %1415 = vset.pattern.permute.xlu0 0
        %1416 = vperm.xlu0 %1415, %v1390
        %v1417 = vpop.permute.xlu0 %1416
        %1418 = vset.pattern.permute.xlu0 0
        %1419 = vperm.xlu0 %1418, %v1392
        %v1420 = vpop.permute.xlu0 %1419
        %1421 = vset.pattern.permute.xlu0 0
        %1422 = vperm.xlu0 %1421, %v1394
        %v1423 = vpop.permute.xlu0 %1422
        %1424 = vset.pattern.permute.xlu0 0
        %1425 = vperm.xlu0 %1424, %v1396
        %v1426 = vpop.permute.xlu0 %1425
        %1427 = vset.pattern.permute.xlu0 0
        %1428 = vperm.xlu0 %1427, %v1398
        %v1429 = vpop.permute.xlu0 %1428
        %1430 = vset.pattern.permute.xlu0 0
        %1431 = vperm.xlu0 %1430, %v1400
        %v1432 = vpop.permute.xlu0 %1431
        %v1433 = vlaneseq
        %v1434 = vshrl.u32 %v1433, 7
        %v1435 = vsub.s32 %v832, %v1434
        %v1436 = vrot.slane %v1411, %v1435
        %v1437 = vlaneseq
        %v1438 = vshrl.u32 %v1437, 7
        %v1439 = vsub.s32 %v832, %v1438
        %v1440 = vrot.slane %v1414, %v1439
        %v1441 = vlaneseq
        %v1442 = vshrl.u32 %v1441, 7
        %v1443 = vsub.s32 %v832, %v1442
        %v1444 = vrot.slane %v1417, %v1443
        %v1445 = vlaneseq
        %v1446 = vshrl.u32 %v1445, 7
        %v1447 = vsub.s32 %v832, %v1446
        %v1448 = vrot.slane %v1420, %v1447
        %v1449 = vlaneseq
        %v1450 = vshrl.u32 %v1449, 7
        %v1451 = vsub.s32 %v832, %v1450
        %v1452 = vrot.slane %v1423, %v1451
        %v1453 = vlaneseq
        %v1454 = vshrl.u32 %v1453, 7
        %v1455 = vsub.s32 %v832, %v1454
        %v1456 = vrot.slane %v1426, %v1455
        %v1457 = vlaneseq
        %v1458 = vshrl.u32 %v1457, 7
        %v1459 = vsub.s32 %v832, %v1458
        %v1460 = vrot.slane %v1429, %v1459
        %v1461 = vlaneseq
        %v1462 = vshrl.u32 %v1461, 7
        %v1463 = vsub.s32 %v832, %v1462
        %v1464 = vrot.slane %v1432, %v1463
        %v1465 = vsel %vm865, %v1440, %v1436
        %v1466 = vsel %vm867, %v1444, %v1465
        %v1467 = vsel %vm869, %v1448, %v1466
        %v1468 = vsel %vm871, %v1452, %v1467
        %v1469 = vsel %vm873, %v1456, %v1468
        %v1470 = vsel %vm875, %v1460, %v1469
        %v1471 = vsel %vm877, %v1464, %v1470
        %v1473 = vsel %vm880, %v1471, 0.0
        %1474 = vadd.xlane.f32.xlu0 %v1473
        %v1475 = vpop.xlane.xlu0 %1474
        %v1476 = vrcp.pop %v1475
        %v1478 = vlaneseq
        %v1479 = vshrl.u32 %v1478, 7
        %v1480 = vsub.s32 0, %v1479
        %v1481 = vrot.slane %v1476, %v1480
        %v1482 = vlaneseq
        %v1483 = vshrl.u32 %v1482, 7
        %v1484 = vsub.s32 1, %v1483
        %v1485 = vrot.slane %v1476, %v1484
        %v1486 = vlaneseq
        %v1487 = vshrl.u32 %v1486, 7
        %v1488 = vsub.s32 2, %v1487
        %v1489 = vrot.slane %v1476, %v1488
        %v1490 = vlaneseq
        %v1491 = vshrl.u32 %v1490, 7
        %v1492 = vsub.s32 3, %v1491
        %v1493 = vrot.slane %v1476, %v1492
        %v1494 = vlaneseq
        %v1495 = vshrl.u32 %v1494, 7
        %v1496 = vsub.s32 4, %v1495
        %v1497 = vrot.slane %v1476, %v1496
        %v1498 = vlaneseq
        %v1499 = vshrl.u32 %v1498, 7
        %v1500 = vsub.s32 5, %v1499
        %v1501 = vrot.slane %v1476, %v1500
        %v1502 = vlaneseq
        %v1503 = vshrl.u32 %v1502, 7
        %v1504 = vsub.s32 6, %v1503
        %v1505 = vrot.slane %v1476, %v1504
        %v1506 = vlaneseq
        %v1507 = vshrl.u32 %v1506, 7
        %v1508 = vsub.s32 7, %v1507
        %v1509 = vrot.slane %v1476, %v1508
        %v1518 = vmul.f32 %v1386, %v1481
        %v1519 = vmul.f32 %v1388, %v1485
        %v1520 = vmul.f32 %v1390, %v1489
        %v1521 = vmul.f32 %v1392, %v1493
        %v1522 = vmul.f32 %v1394, %v1497
        %v1523 = vmul.f32 %v1396, %v1501
        %v1524 = vmul.f32 %v1398, %v1505
        %v1525 = vmul.f32 %v1400, %v1509
        %1527 = vset.pattern.permute.xlu0 0
        %1528 = vperm.xlu0 %1527, %v1518
        %v1529 = vpop.permute.xlu0 %1528
        %1532 = vset.pattern.permute.xlu0 0
        %1533 = vperm.xlu0 %1532, %v1519
        %v1534 = vpop.permute.xlu0 %1533
        %1537 = vset.pattern.permute.xlu0 0
        %1538 = vperm.xlu0 %1537, %v1520
        %v1539 = vpop.permute.xlu0 %1538
        %1542 = vset.pattern.permute.xlu0 0
        %1543 = vperm.xlu0 %1542, %v1521
        %v1544 = vpop.permute.xlu0 %1543
        %1547 = vset.pattern.permute.xlu0 0
        %1548 = vperm.xlu0 %1547, %v1522
        %v1549 = vpop.permute.xlu0 %1548
        %1552 = vset.pattern.permute.xlu0 0
        %1553 = vperm.xlu0 %1552, %v1523
        %v1554 = vpop.permute.xlu0 %1553
        %1557 = vset.pattern.permute.xlu0 0
        %1558 = vperm.xlu0 %1557, %v1524
        %v1559 = vpop.permute.xlu0 %1558
        %1562 = vset.pattern.permute.xlu0 0
        %1563 = vperm.xlu0 %1562, %v1525
        %v1564 = vpop.permute.xlu0 %1563
        %v1566 = vmul.f32 %v1529, %v670
        %v1567 = vmul.f32 %v1534, %v673
        %v1568 = vmul.f32 %v1539, %v678
        %v1569 = vmul.f32 %v1544, %v681
        %v1570 = vmul.f32 %v1549, %v686
        %v1571 = vmul.f32 %v1554, %v689
        %v1572 = vmul.f32 %v1559, %v694
        %v1573 = vmul.f32 %v1564, %v697
        %vm1574 = vcmask 261248
        %v1575 = vsel %vm1574, %v1566, 0.0
        %v1576 = vrot.slane %v1575, 4
        %v1577 = vadd.f32 %v1575, %v1576
        %v1578 = vrot.slane %v1577, 2
        %v1579 = vadd.f32 %v1577, %v1578
        %v1580 = vrot.slane %v1579, 1
        %v1581 = vadd.f32 %v1579, %v1580
        %v1582 = vsel %vm1574, %v1567, 0.0
        %v1583 = vrot.slane %v1582, 4
        %v1584 = vadd.f32 %v1582, %v1583
        %v1585 = vrot.slane %v1584, 2
        %v1586 = vadd.f32 %v1584, %v1585
        %v1587 = vrot.slane %v1586, 1
        %v1588 = vadd.f32 %v1586, %v1587
        %v1589 = vsel %vm1574, %v1568, 0.0
        %v1590 = vrot.slane %v1589, 4
        %v1591 = vadd.f32 %v1589, %v1590
        %v1592 = vrot.slane %v1591, 2
        %v1593 = vadd.f32 %v1591, %v1592
        %v1594 = vrot.slane %v1593, 1
        %v1595 = vadd.f32 %v1593, %v1594
        %v1596 = vsel %vm1574, %v1569, 0.0
        %v1597 = vrot.slane %v1596, 4
        %v1598 = vadd.f32 %v1596, %v1597
        %v1599 = vrot.slane %v1598, 2
        %v1600 = vadd.f32 %v1598, %v1599
        %v1601 = vrot.slane %v1600, 1
        %v1602 = vadd.f32 %v1600, %v1601
        %v1603 = vsel %vm1574, %v1570, 0.0
        %v1604 = vrot.slane %v1603, 4
        %v1605 = vadd.f32 %v1603, %v1604
        %v1606 = vrot.slane %v1605, 2
        %v1607 = vadd.f32 %v1605, %v1606
        %v1608 = vrot.slane %v1607, 1
        %v1609 = vadd.f32 %v1607, %v1608
        %v1610 = vsel %vm1574, %v1571, 0.0
        %v1611 = vrot.slane %v1610, 4
        %v1612 = vadd.f32 %v1610, %v1611
        %v1613 = vrot.slane %v1612, 2
        %v1614 = vadd.f32 %v1612, %v1613
        %v1615 = vrot.slane %v1614, 1
        %v1616 = vadd.f32 %v1614, %v1615
        %v1617 = vsel %vm1574, %v1572, 0.0
        %v1618 = vrot.slane %v1617, 4
        %v1619 = vadd.f32 %v1617, %v1618
        %v1620 = vrot.slane %v1619, 2
        %v1621 = vadd.f32 %v1619, %v1620
        %v1622 = vrot.slane %v1621, 1
        %v1623 = vadd.f32 %v1621, %v1622
        %v1624 = vsel %vm1574, %v1573, 0.0
        %v1625 = vrot.slane %v1624, 4
        %v1626 = vadd.f32 %v1624, %v1625
        %v1627 = vrot.slane %v1626, 2
        %v1628 = vadd.f32 %v1626, %v1627
        %v1629 = vrot.slane %v1628, 1
        %v1630 = vadd.f32 %v1628, %v1629
        %v1631 = vadd.s32 %v832, 4294967288
        %v1632 = vlaneseq
        %v1633 = vshrl.u32 %v1632, 7
        %v1634 = vsub.s32 %v1631, %v1633
        %v1635 = vrot.slane %v1529, %v1634
        %v1636 = vlaneseq
        %v1637 = vshrl.u32 %v1636, 7
        %v1638 = vsub.s32 %v1631, %v1637
        %v1639 = vrot.slane %v1534, %v1638
        %v1640 = vlaneseq
        %v1641 = vshrl.u32 %v1640, 7
        %v1642 = vsub.s32 %v1631, %v1641
        %v1643 = vrot.slane %v1539, %v1642
        %v1644 = vlaneseq
        %v1645 = vshrl.u32 %v1644, 7
        %v1646 = vsub.s32 %v1631, %v1645
        %v1647 = vrot.slane %v1544, %v1646
        %v1648 = vlaneseq
        %v1649 = vshrl.u32 %v1648, 7
        %v1650 = vsub.s32 %v1631, %v1649
        %v1651 = vrot.slane %v1549, %v1650
        %v1652 = vlaneseq
        %v1653 = vshrl.u32 %v1652, 7
        %v1654 = vsub.s32 %v1631, %v1653
        %v1655 = vrot.slane %v1554, %v1654
        %v1656 = vlaneseq
        %v1657 = vshrl.u32 %v1656, 7
        %v1658 = vsub.s32 %v1631, %v1657
        %v1659 = vrot.slane %v1559, %v1658
        %v1660 = vlaneseq
        %v1661 = vshrl.u32 %v1660, 7
        %v1662 = vsub.s32 %v1631, %v1661
        %v1663 = vrot.slane %v1564, %v1662
        %v1664 = vsel %vm865, %v1639, %v1635
        %v1665 = vsel %vm867, %v1643, %v1664
        %v1666 = vsel %vm869, %v1647, %v1665
        %v1667 = vsel %vm871, %v1651, %v1666
        %v1668 = vsel %vm873, %v1655, %v1667
        %v1669 = vsel %vm875, %v1659, %v1668
        %v1670 = vsel %vm877, %v1663, %v1669
        %vm1672 = vcmask 130112
        %1673 = vst.msk [vmem:[%s414] sm:$0xff] %vm1672, %v1670
        %v1674 = vpack.c.bf16 %v1581, %v1581
        %v1675 = vpack.c.bf16 %v1588, %v1588
        %v1676 = vpack.c.bf16 %v1595, %v1595
        %v1677 = vpack.c.bf16 %v1602, %v1602
        %v1678 = vpack.c.bf16 %v1609, %v1609
        %v1679 = vpack.c.bf16 %v1616, %v1616
        %v1680 = vpack.c.bf16 %v1623, %v1623
        %v1681 = vpack.c.bf16 %v1630, %v1630
        %v1682 = vld [vmem:[%s8 + $0x8] sm:$0xf]
        %v1683 = vld [vmem:[%s8 + $0xc] sm:$0xf]
        %v1692 = vunpack.c.l.b16 %v1674
        %v1693 = vunpack.c.l.b16 %v1675
        %v1694 = vunpack.c.l.b16 %v1676
        %v1695 = vunpack.c.l.b16 %v1677
        %v1696 = vunpack.c.l.b16 %v1678
        %v1697 = vunpack.c.l.b16 %v1679
        %v1698 = vunpack.c.l.b16 %v1680
        %v1699 = vunpack.c.l.b16 %v1681
        %v1700 = vsel %vm865, %v1693, %v1692
        %v1701 = vsel %vm867, %v1694, %v1700
        %v1702 = vsel %vm869, %v1695, %v1701
        %v1703 = vsel %vm871, %v1696, %v1702
        %v1704 = vsel %vm873, %v1697, %v1703
        %v1705 = vsel %vm875, %v1698, %v1704
        %v1706 = vsel %vm877, %v1699, %v1705
        %v1707 = vpack.c.b16 %v1706, %v1706
        %1708 = vrot.lane.b32.xlu0 %v1707, 112
        %v1709 = vpop.permute.xlu0 %1708
        %v1712 = vunpack.c.l.b16 %v1682
        %v1713 = vunpack.c.l.b16 %v1683
        %v1714 = vpack.c.b16 %v1713, %v1712
        %v1717 = vsel %vm798, %v1709, 0
        %1719 = vmatprep.subr.bf16.mxu0 0
        %1720 = vmatpush1.bf16.msra.mxu0 %v1714
        %1721 = vmatprep.subr.bf16.mxu0 0
        %1722 = vmatpush1.bf16.msra.mxu0 0
        %1723 = vmatprep.subr.bf16.mxu0 0
        %1724 = vmatpush1.bf16.msra.mxu0 0
        %1725 = vmatprep.subr.bf16.mxu0 0
        %1726 = vmatpush1.bf16.msra.mxu0 0
        %1727 = vmatprep.subr.bf16.mxu0 0
        %1728 = vmatpush1.bf16.msra.mxu0 0
        %1729 = vmatprep.subr.bf16.mxu0 0
        %1730 = vmatpush1.bf16.msra.mxu0 0
        %1731 = vmatprep.subr.bf16.mxu0 0
        %1732 = vmatpush1.bf16.msra.mxu0 0
        %1733 = vmatprep.subr.bf16.mxu0 0
        %1734 = vmatpush1.bf16.msra.mxu0 0
        %1735 = vmatprep.subr.bf16.mxu0 0
        %1736 = vmatpush1.bf16.msra.mxu0 0
        %1737 = vmatprep.subr.bf16.mxu0 0
        %1738 = vmatpush1.bf16.msra.mxu0 0
        %1739 = vmatprep.subr.bf16.mxu0 0
        %1740 = vmatpush1.bf16.msra.mxu0 0
        %1741 = vmatprep.subr.bf16.mxu0 0
        %1742 = vmatpush1.bf16.msra.mxu0 0
        %1743 = vmatprep.subr.bf16.mxu0 0
        %1744 = vmatpush1.bf16.msra.mxu0 0
        %1745 = vmatprep.subr.bf16.mxu0 0
        %1746 = vmatpush1.bf16.msra.mxu0 0
        %1747 = vmatprep.subr.bf16.mxu0 0
        %1748 = vmatpush1.bf16.msra.mxu0 0
        %1749 = vmatprep.subr.bf16.mxu0 0
        %1750 = vmatpush1.bf16.msra.mxu0 0
        %1751 = vmatprep.mubr.bf16.mxu0 0
        %1752 = vmatmul.mubr.bf16.gmra.mrb[0].mxu0 %v1717
        %v1753 = vpop.f32.mrb[0].mxu0
        %v1754 = vadd.f32 0.0, %v1753
        %v1755 = vpop.f32.mrb[0].mxu0
        %v1756 = vpop.f32.mrb[0].mxu0
        %v1757 = vpop.f32.mrb[0].mxu0
        %1758 = vdwg.mxu0
        %v1767 = vunpack.c.l.b16 %v1219
        %v1768 = vunpack.c.l.b16 %v1220
        %v1769 = vunpack.c.l.b16 %v1221
        %v1770 = vunpack.c.l.b16 %v1222
        %v1771 = vunpack.c.l.b16 %v1223
        %v1772 = vunpack.c.l.b16 %v1224
        %v1773 = vunpack.c.l.b16 %v1225
        %v1774 = vunpack.c.l.b16 %v1226
        %v1775 = vsel %vm865, %v1768, %v1767
        %v1776 = vsel %vm867, %v1769, %v1775
        %v1777 = vsel %vm869, %v1770, %v1776
        %v1778 = vsel %vm871, %v1771, %v1777
        %v1779 = vsel %vm873, %v1772, %v1778
        %v1780 = vsel %vm875, %v1773, %v1779
        %v1781 = vsel %vm877, %v1774, %v1780
        %v1782 = vpack.c.b16 %v1781, %v1781
        %v1785 = vunpack.c.l.b16 %v1227
        %v1786 = vunpack.c.l.b16 %v1228
        %v1787 = vpack.c.b16 %v1786, %v1785
        %v1790 = vsel %vm798, %v1782, 0
        %1792 = vmatprep.subr.bf16.mxu0 0
        %1793 = vmatpush1.bf16.msra.mxu0 %v1787
        %1794 = vmatprep.subr.bf16.mxu0 0
        %1795 = vmatpush1.bf16.msra.mxu0 0
        %1796 = vmatprep.subr.bf16.mxu0 0
        %1797 = vmatpush1.bf16.msra.mxu0 0
        %1798 = vmatprep.subr.bf16.mxu0 0
        %1799 = vmatpush1.bf16.msra.mxu0 0
        %1800 = vmatprep.subr.bf16.mxu0 0
        %1801 = vmatpush1.bf16.msra.mxu0 0
        %1802 = vmatprep.subr.bf16.mxu0 0
        %1803 = vmatpush1.bf16.msra.mxu0 0
        %1804 = vmatprep.subr.bf16.mxu0 0
        %1805 = vmatpush1.bf16.msra.mxu0 0
        %1806 = vmatprep.subr.bf16.mxu0 0
        %1807 = vmatpush1.bf16.msra.mxu0 0
        %1808 = vmatprep.subr.bf16.mxu0 0
        %1809 = vmatpush1.bf16.msra.mxu0 0
        %1810 = vmatprep.subr.bf16.mxu0 0
        %1811 = vmatpush1.bf16.msra.mxu0 0
        %1812 = vmatprep.subr.bf16.mxu0 0
        %1813 = vmatpush1.bf16.msra.mxu0 0
        %1814 = vmatprep.subr.bf16.mxu0 0
        %1815 = vmatpush1.bf16.msra.mxu0 0
        %1816 = vmatprep.subr.bf16.mxu0 0
        %1817 = vmatpush1.bf16.msra.mxu0 0
        %1818 = vmatprep.subr.bf16.mxu0 0
        %1819 = vmatpush1.bf16.msra.mxu0 0
        %1820 = vmatprep.subr.bf16.mxu0 0
        %1821 = vmatpush1.bf16.msra.mxu0 0
        %1822 = vmatprep.subr.bf16.mxu0 0
        %1823 = vmatpush1.bf16.msra.mxu0 0
        %1824 = vmatprep.mubr.bf16.mxu0 0
        %1825 = vmatmul.mubr.bf16.gmra.mrb[0].mxu0 %v1790
        %v1826 = vpop.f32.mrb[0].mxu0
        %v1827 = vadd.f32 %v1754, %v1826
        %v1828 = vpop.f32.mrb[0].mxu0
        %v1829 = vpop.f32.mrb[0].mxu0
        %v1830 = vpop.f32.mrb[0].mxu0
        %1831 = vdwg.mxu0
        %v1832 = vld [vmem:[%s9] sm:$0x1]
        %v1834 = vlaneseq
        %v1835 = vshrl.u32 %v1834, 7
        %v1836 = vsub.s32 0, %v1835
        %v1837 = vrot.slane %v1832, %v1836
        %v1839 = vadd.f32 %v1827, %v1837
        %1840 = vst.msk [vmem:[%s394] sm:$0xff] %vm448, %v1839
        %s1841 = sand.u32 %s254, 1
        %s1842 = scalar_lea.sflag [#allocation3], %s1841
        %s1843 = sand.u32 %s254, 1
        %s1844 = smul.addr %s1843, 8
        %s1845 = scalar_lea.vmem [#allocation2], %s1844
        %p1846 = scmp.lt.s32.totalorder %s26, 3
        %s1847 = scalar_select %p1846, %s26, 3
        %s1848 = smul.addr %s1847, 8
        %s1849 = scalar_lea.vmem %s11, %s1848
        // Predicated region
        $region61: #{tpu_custom_call.1} parent=59 // pred_check
          %p1850 = pneg %p264
        $region62: #{tpu_custom_call.1} parent=59 // pred_check_branch
          %1852 = sbr.rel (%p1850) target = $region64
        $region63: #{tpu_custom_call.1} parent=59 // pred_region
          %s1854 = ssub.s32 128, 128
          %1855 = vsyncadd %s1842, %s1854
          %s1856 = smul.addr %s26, 128
          %s1857 = scalar_lea.hbm %s10, %s1856
          %s1859 = sshll.u32 %s1845, 4
          %s1860 = int_to_ptr.vmem [resolvable:$true] %s1859
          %1862 = dma.vmem_to_hbm [thread:$0]  %s1860, 128, %s1857, %s1842
        $region64: #{tpu_custom_call.1} parent=59 // pred_fallthru
          _
        // Predicated region
        $region65: #{tpu_custom_call.1} parent=59 // pred_check
          %p1863 = pneg %p290
        $region66: #{tpu_custom_call.1} parent=59 // pred_check_branch
          %1865 = sbr.rel (%p1863) target = $region68
        $region67: #{tpu_custom_call.1} parent=59 // pred_region
          _
        $region68: #{tpu_custom_call.1} parent=59 // pred_fallthru
          _
      $region60: #{tpu_custom_call.1} parent=5 // pred_fallthru
        _
      %p1866 = scmp.le.s32.totalorder 2, %s21
      // Predicated region
      $region69: #{tpu_custom_call.1} parent=5 // pred_check
        %p1867 = pneg %p1866
      $region70: #{tpu_custom_call.1} parent=5 // pred_check_branch
        %1869 = sbr.rel (%p1867) target = $region72
      $region71: #{tpu_custom_call.1} parent=5 // pred_region
        %s1870 = ssub.s32 %s21, 2
        // Predicated region
        $region73: #{tpu_custom_call.1} parent=71 // pred_check
          %p1871 = pneg %p270
        $region74: #{tpu_custom_call.1} parent=71 // pred_check_branch
          %1873 = sbr.rel (%p1871) target = $region76
        $region75: #{tpu_custom_call.1} parent=71 // pred_region
          %s1874 = sand.u32 %s255, 1
          %s1875 = scalar_lea.sflag [#allocation3], %s1874
          %s1876 = sand.u32 %s255, 1
          %s1877 = smul.addr %s1876, 8
          %s1878 = scalar_lea.vmem [#allocation2], %s1877
          %1879 = dma.done %s1875, 128
        $region76: #{tpu_custom_call.1} parent=71 // pred_fallthru
          _
        // Predicated region
        $region77: #{tpu_custom_call.1} parent=71 // pred_check
          %p1880 = pneg %p296
        $region78: #{tpu_custom_call.1} parent=71 // pred_check_branch
          %1882 = sbr.rel (%p1880) target = $region80
        $region79: #{tpu_custom_call.1} parent=71 // pred_region
          %p1883 = scmp.lt.s32.totalorder %s27, 3
          %s1884 = scalar_select %p1883, %s27, 3
          %s1885 = smul.addr %s1884, 8
          %s1886 = scalar_lea.vmem %s11, %s1885
        $region80: #{tpu_custom_call.1} parent=71 // pred_fallthru
          _
      $region72: #{tpu_custom_call.1} parent=5 // pred_fallthru
        _
    $region6: #{tpu_custom_call.1} parent=1 // loop_footer
      %s25 = sadd.s32 1, %s21
    $region7: #{tpu_custom_call.1} parent=1 // loop_footer_branch
      %20 = sbr.rel target = $region3
    $region8: #{tpu_custom_call.1} parent=1 // loop_exit
      _
    %1887 = vsyncpa [#allocation3], 1
    %s1888 = scalar_lea.sflag [#allocation3], 1
    %1889 = vsyncpa %s1888, 1

</llo_original>
